<compile_context>
chip_gen: v6e
topology: v6e:2x2x1
jax: 0.10.0
libtpu: 0.0.40
codegen_flags: <defaults>
</compile_context>

<pallas_src>
import jax
import jax.numpy as jnp
from jax.experimental import pallas as pl
from jax.experimental.pallas import tpu as pltpu

KH = KW = 7
KK = KH * KW
PAD = 3
OFFS = tuple(d for d in range(-PAD, PAD + 1) if d != 0)   # (-3,-2,-1,1,2,3)


def _make_sam_kernel(C, Cb, W, HWp):
    """C: total channels, Cb: channel block, W: image width, HWp: padded H*W."""
    rem = C % Cb  # static; > 0 only when the last channel block is ragged

    def kernel(x_ref, m_ref, w_ref, b_ref, o_ref, sum_ref, max_ref):
        # x_ref:  (Nb, Cb, HWp) VMEM input block (lane-dense, HWp last)
        # m_ref:  (12, HWp) f32 VMEM precomputed border masks
        #         rows 0..5  = column masks for dj in OFFS
        #         rows 6..11 = row    masks for di in OFFS
        # w_ref:  (98,) f32 SMEM (flattened (1,2,7,7) conv weight)
        # b_ref:  (1,)  f32 SMEM
        # o_ref:  (Nb, 1, HWp) output block
        # sum_ref/max_ref: (Nb, HWp) f32 scratch accumulators (persist over C axis)
        c_step = pl.program_id(1)
        n_c = pl.num_programs(1)

        @pl.when(c_step == 0)
        def _():
            sum_ref[...] = jnp.zeros(sum_ref.shape, sum_ref.dtype)
            max_ref[...] = jnp.full(max_ref.shape, -jnp.inf, dtype=max_ref.dtype)

        # ---- lane-dense channel reduction over this C block --------------------
        if rem == 0:
            x = x_ref[...].astype(jnp.float32)                  # (Nb, Cb, HWp)
            sum_ref[...] = sum_ref[...] + jnp.sum(x, axis=1)
            max_ref[...] = jnp.maximum(max_ref[...], jnp.max(x, axis=1))
        else:
            is_last = c_step == n_c - 1

            @pl.when(jnp.logical_not(is_last))
            def _():
                x = x_ref[...].astype(jnp.float32)
                sum_ref[...] = sum_ref[...] + jnp.sum(x, axis=1)
                max_ref[...] = jnp.maximum(max_ref[...], jnp.max(x, axis=1))

            @pl.when(is_last)
            def _():
                # Ragged last channel block: only `rem` channels are valid.
                x = x_ref[...].astype(jnp.float32)
                ch = jax.lax.broadcasted_iota(jnp.int32, x.shape, 1)
                valid = ch < rem
                sum_ref[...] = sum_ref[...] + jnp.sum(jnp.where(valid, x, 0.0), axis=1)
                max_ref[...] = jnp.maximum(
                    max_ref[...], jnp.max(jnp.where(valid, x, -jnp.inf), axis=1))

        # ---- finalize: 7x7 conv over [avg, max] + sigmoid -----------------------
        @pl.when(c_step == n_c - 1)
        def _():
            Nb = sum_ref.shape[0]
            avg = sum_ref[...] * (1.0 / C)                      # (Nb, HWp)
            mx = max_ref[...]                                   # (Nb, HWp)

            # Hoist all SMEM scalar reads and the 12 border masks out of the loops.
            wv = [w_ref[i] for i in range(2 * KK)]
            bias = b_ref[0]
            n_off = len(OFFS)
            cmask, rmask = {}, {}
            for idx, d in enumerate(OFFS):
                cmask[d] = m_ref[idx:idx + 1, :]                # (1, HWp) f32 0/1
                rmask[d] = m_ref[n_off + idx:n_off + idx + 1, :]

            # kj-outer with per-ki row accumulators: the column-shifted maps are
            # consumed immediately (no 14 pre-materialized copies), the border
            # masks are plain multiplies, and the row shift/mask is applied once
            # per ki at the end.  Circular roll on the flat HWp axis + masks
            # reproduces the conv's zero "same" padding exactly.
            rowacc = [None] * KH
            for kj in range(KW):
                dj = kj - PAD
                if dj == 0:
                    a_j, m_j = avg, mx
                else:
                    s = (-dj) % HWp
                    cm = cmask[dj]
                    a_j = pltpu.roll(avg, shift=s, axis=1) * cm
                    m_j = pltpu.roll(mx, shift=s, axis=1) * cm
                for ki in range(KH):
                    t = wv[ki * KW + kj] * a_j + wv[KK + ki * KW + kj] * m_j
                    rowacc[ki] = t if rowacc[ki] is None else rowacc[ki] + t

            acc = jnp.full((Nb, HWp), bias, dtype=jnp.float32)
            for ki in range(KH):
                di = ki - PAD
                inner = rowacc[ki]
                if di != 0:
                    s = (-di * W) % HWp
                    inner = pltpu.roll(inner, shift=s, axis=1) * rmask[di]
                acc = acc + inner

            sig = jax.nn.sigmoid(acc).astype(o_ref.dtype)       # (Nb, HWp)
            # Per-row store into the (Nb, 1, HWp) output block (Nb <= 8): keeps
            # the epilogue arrays sublane-packed and every store full-lane.
            for n in range(Nb):
                o_ref[n] = sig[n:n + 1, :]

    return kernel


def _device_budgets():
    """(double-buffered-input budget, vmem_limit) per TPU generation."""
    kind = ""
    try:
        kind = jax.devices()[0].device_kind.lower()
    except Exception:
        pass
    if "v6" in kind:                      # v6e: 128 MiB physical VMEM
        return 48 << 20, 96 << 20
    if "v5" in kind:                      # v5e: 128 MiB physical, 16 MiB default scoped
        return 24 << 20, 48 << 20
    if "v7" in kind or "7x" in kind:      # v7x: 64 MiB physical per TensorCore
        return 20 << 20, 44 << 20
    return 20 << 20, 44 << 20             # conservative default


def _pick_blocks(N, C, HWp, itemsize, in_budget):
    """Pick (Nb, Cb). Nb divides N (no HBM batch pad) and keeps the parallel
    batch-grid extent >= 2 when N >= 2 (v7x has two TensorCores)."""
    nb_cap = 8 if N >= 16 else max(1, N // 2)
    nb_cap = min(nb_cap, N)
    Nb = 1
    for d in range(1, nb_cap + 1):
        if N % d == 0:
            Nb = d

    def dbuf_in(nb, cb):                  # double-buffered input block bytes
        return 2 * nb * cb * HWp * itemsize

    cb_min = C if C < 8 else 8
    while Nb > 1 and dbuf_in(Nb, cb_min) > in_budget:
        nxt = 1
        for d in range(1, Nb):
            if N % d == 0:
                nxt = d
        Nb = nxt

    if C <= 8 or dbuf_in(Nb, C) <= in_budget:
        Cb = C                            # one contiguous DMA per batch block
    else:
        cap = in_budget // (2 * Nb * HWp * itemsize)
        cap8 = max(8, (cap // 8) * 8)
        best = None
        for d in range(8, min(cap8, C) + 1, 8):   # prefer a divisor (no ragged block)
            if C % d == 0:
                best = d
        Cb = best if best is not None else min(cap8, max(8, (C // 8) * 8))
    return Nb, int(Cb)


def _border_masks(H, W, HWp):
    """(12, HWp) f32 0/1: rows 0..5 column masks, rows 6..11 row masks (per OFFS)."""
    ids = jnp.arange(HWp, dtype=jnp.int32)
    col = ids % W
    row = ids // W
    cm = [((col + d >= 0) & (col + d < W)) for d in OFFS]
    rm = [((row + d >= 0) & (row + d < H)) for d in OFFS]
    return jnp.stack(cm + rm, axis=0).astype(jnp.float32)


def spatial_attention(x, weight, bias):
    """x: (N, C, H, W); weight: (1, 2, 7, 7); bias: (1,). Returns (N, 1, H, W)."""
    N, C, H, W = x.shape
    HW = H * W
    HWp = -(-HW // 128) * 128
    itemsize = jnp.dtype(x.dtype).itemsize

    in_budget, vmem_cap = _device_budgets()
    Nb, Cb = _pick_blocks(N, C, HWp, itemsize, in_budget)

    xf = x.reshape(N, C, HW)              # contiguous view, free
    if HWp != HW:
        # TODO(synk): this pad copies x once in HBM; it is only taken when H*W is
        # not a multiple of 128 (lane width) and buys unmasked full-lane vst.
        xf = jnp.pad(xf, ((0, 0), (0, 0), (0, HWp - HW)))

    masks = _border_masks(H, W, HWp)                              # (12, HWp) f32
    w_flat = weight.reshape(-1).astype(jnp.float32)               # (98,)
    b = bias.reshape(-1).astype(jnp.float32)                      # (1,)

    grid = (N // Nb, pl.cdiv(C, Cb))

    in_block = Nb * Cb * HWp * itemsize
    out_block = Nb * HWp * itemsize
    scratch = 2 * Nb * HWp * 4
    needed = 2 * in_block + 2 * out_block + scratch + 2 * masks.size * 4 + (2 << 20)

    cp_kwargs = dict(dimension_semantics=("parallel", "arbitrary"))
    if needed > (16 << 20):               # only raise the scoped limit when required
        cp_kwargs["vmem_limit_bytes"] = int(max(needed + (4 << 20), vmem_cap))

    out = pl.pallas_call(
        _make_sam_kernel(C, Cb, W, HWp),
        out_shape=jax.ShapeDtypeStruct((N, 1, HWp), x.dtype),
        grid=grid,
        in_specs=[
            pl.BlockSpec((Nb, Cb, HWp), lambda n, c: (n, c, 0)),
            pl.BlockSpec((12, HWp), lambda n, c: (0, 0)),
            pl.BlockSpec(memory_space=pltpu.MemorySpace.SMEM),
            pl.BlockSpec(memory_space=pltpu.MemorySpace.SMEM),
        ],
        out_specs=pl.BlockSpec((Nb, 1, HWp), lambda n, c: (n, 0, 0)),
        scratch_shapes=[
            pltpu.VMEM((Nb, HWp), jnp.float32),   # running channel sum
            pltpu.VMEM((Nb, HWp), jnp.float32),   # running channel max
        ],
        compiler_params=pltpu.CompilerParams(**cp_kwargs),
    )(xf, masks, w_flat, b)

    return out[:, :, :HW].reshape(N, 1, H, W)


def _reference(x, weight, bias):
    """Pure-JAX reference mirroring the PyTorch forward."""
    avgout = jnp.mean(x, axis=1, keepdims=True)
    maxout = jnp.max(x, axis=1, keepdims=True)
    out = jnp.concatenate([avgout, maxout], axis=1)               # (N, 2, H, W)
    conv = jax.lax.conv_general_dilated(
        out, weight, window_strides=(1, 1), padding=((PAD, PAD), (PAD, PAD)),
        dimension_numbers=("NCHW", "OIHW", "NCHW"))
    return jax.nn.sigmoid(conv + bias.reshape(1, 1, 1, 1))


if __name__ == "__main__":
    key = jax.random.PRNGKey(0)
    k_x, k_w, k_b = jax.random.split(key, 3)

    # Shapes implied by the module: nn.Conv2d(2, 1, 7, padding=3) on (N, C, H, W).
    N, C, H, W = 2, 4, 16, 16
    x = jax.random.normal(k_x, (N, C, H, W), dtype=jnp.float32)
    weight = jax.random.normal(k_w, (1, 2, KH, KW), dtype=jnp.float32) * 0.1
    bias = jax.random.normal(k_b, (1,), dtype=jnp.float32) * 0.1

    out = jax.block_until_ready(spatial_attention(x, weight, bias))
    ref = _reference(x, weight, bias)
    assert out.shape == (N, 1, H, W)
    assert jnp.allclose(out, ref, atol=1e-5, rtol=1e-5), "mismatch vs reference"

    # Second small config exercising Nb > 1 (multi-row output block).
    N2, C2 = 4, 8
    x2 = jax.random.normal(k_x, (N2, C2, H, W), dtype=jnp.float32)
    out2 = jax.block_until_ready(spatial_attention(x2, weight, bias))
    ref2 = _reference(x2, weight, bias)
    assert out2.shape == (N2, 1, H, W)
    assert jnp.allclose(out2, ref2, atol=1e-5, rtol=1e-5), "mismatch vs reference (2)"

    print("KERNEL_OK")
</pallas_src>

<mosaic_0001>
module attributes {stable_mosaic.version = 11 : i64} {
  func.func @kernel(%arg0: i32, %arg1: i32, %arg2: memref<1x4x256xf32, #tpu.memory_space<vmem>>, %arg3: memref<12x256xf32, #tpu.memory_space<vmem>>, %arg4: memref<98xf32, #tpu.memory_space<smem>>, %arg5: memref<1xf32, #tpu.memory_space<smem>>, %arg6: memref<1x1x256xf32, #tpu.memory_space<vmem>>, %arg7: memref<1x256xf32, #tpu.memory_space<vmem>>, %arg8: memref<1x256xf32, #tpu.memory_space<vmem>>) attributes {dimension_semantics = [#tpu.dimension_semantics<parallel>, #tpu.dimension_semantics<arbitrary>], iteration_bounds = array<i64: 2, 1>, scalar_prefetch = 0 : i64, scratch_operands = 2 : i64, tpu.core_type = #tpu.core_type<tc>, window_params = [{transform_indices = @transform_0, window_bounds = array<i64: 1, 4, 256>}, {pipeline_mode = #tpu.pipeline_mode<synchronous>, transform_indices = @transform_1, window_bounds = array<i64: 12, 256>}, {transform_indices = @transform_2, window_bounds = array<i64: 98>}, {transform_indices = @transform_3, window_bounds = array<i64: 1>}, {transform_indices = @transform_4, window_bounds = array<i64: 1, 1, 256>}]} {
    %c0_i32 = arith.constant 0 : i32
    %0 = arith.cmpi eq, %arg1, %c0_i32 : i32
    %1 = arith.extui %0 : i1 to i32
    %c0_i32_0 = arith.constant 0 : i32
    %2 = arith.cmpi ne, %1, %c0_i32_0 : i32
    scf.if %2 {
      %cst_14 = arith.constant 0.000000e+00 : f32
      %15 = vector.broadcast %cst_14 : f32 to vector<1x256xf32>
      %c0_15 = arith.constant 0 : index
      %c0_16 = arith.constant 0 : index
      %16 = vector.load %arg7[%c0_15, %c0_16] : memref<1x256xf32, #tpu.memory_space<vmem>>, vector<1x256xf32>
      tpu.vector_store %arg7[%c0_15, %c0_16], %15 {strides = array<i32>} : memref<1x256xf32, #tpu.memory_space<vmem>>, vector<1x256xf32>,
      %cst_17 = arith.constant 0xFF800000 : f32
      %17 = vector.broadcast %cst_17 : f32 to vector<1x256xf32>
      %c0_18 = arith.constant 0 : index
      %c0_19 = arith.constant 0 : index
      %18 = vector.load %arg8[%c0_18, %c0_19] : memref<1x256xf32, #tpu.memory_space<vmem>>, vector<1x256xf32>
      tpu.vector_store %arg8[%c0_18, %c0_19], %17 {strides = array<i32>} : memref<1x256xf32, #tpu.memory_space<vmem>>, vector<1x256xf32>,
    } else {
    }
    %c0 = arith.constant 0 : index
    %c0_1 = arith.constant 0 : index
    %c0_2 = arith.constant 0 : index
    %3 = vector.load %arg2[%c0, %c0_1, %c0_2] : memref<1x4x256xf32, #tpu.memory_space<vmem>>, vector<1x4x256xf32>
    %c0_3 = arith.constant 0 : index
    %c0_4 = arith.constant 0 : index
    %4 = vector.load %arg7[%c0_3, %c0_4] : memref<1x256xf32, #tpu.memory_space<vmem>>, vector<1x256xf32>
    %cst = arith.constant dense<0.000000e+00> : vector<1x256xf32>
    %5 = vector.multi_reduction <add>, %3, %cst [1] : vector<1x4x256xf32> to vector<1x256xf32>
    %6 = arith.addf %4, %5 : vector<1x256xf32>
    %c0_5 = arith.constant 0 : index
    %c0_6 = arith.constant 0 : index
    %7 = vector.load %arg7[%c0_5, %c0_6] : memref<1x256xf32, #tpu.memory_space<vmem>>, vector<1x256xf32>
    tpu.vector_store %arg7[%c0_5, %c0_6], %6 {strides = array<i32>} : memref<1x256xf32, #tpu.memory_space<vmem>>, vector<1x256xf32>,
    %c0_7 = arith.constant 0 : index
    %c0_8 = arith.constant 0 : index
    %8 = vector.load %arg8[%c0_7, %c0_8] : memref<1x256xf32, #tpu.memory_space<vmem>>, vector<1x256xf32>
    %cst_9 = arith.constant dense<0xFF800000> : vector<1x256xf32>
    %9 = vector.multi_reduction <maximumf>, %3, %cst_9 [1] : vector<1x4x256xf32> to vector<1x256xf32>
    %10 = arith.maximumf %8, %9 : vector<1x256xf32>
    %c0_10 = arith.constant 0 : index
    %c0_11 = arith.constant 0 : index
    %11 = vector.load %arg8[%c0_10, %c0_11] : memref<1x256xf32, #tpu.memory_space<vmem>>, vector<1x256xf32>
    tpu.vector_store %arg8[%c0_10, %c0_11], %10 {strides = array<i32>} : memref<1x256xf32, #tpu.memory_space<vmem>>, vector<1x256xf32>,
    %c0_i32_12 = arith.constant 0 : i32
    %12 = arith.cmpi eq, %arg1, %c0_i32_12 : i32
    %13 = arith.extui %12 : i1 to i32
    %c0_i32_13 = arith.constant 0 : i32
    %14 = arith.cmpi ne, %13, %c0_i32_13 : i32
    scf.if %14 {
      %c0_14 = arith.constant 0 : index
      %c0_15 = arith.constant 0 : index
      %15 = vector.load %arg7[%c0_14, %c0_15] : memref<1x256xf32, #tpu.memory_space<vmem>>, vector<1x256xf32>
      %cst_16 = arith.constant 2.500000e-01 : f32
      %16 = vector.broadcast %cst_16 : f32 to vector<1x256xf32>
      %17 = arith.mulf %15, %16 : vector<1x256xf32>
      %c0_17 = arith.constant 0 : index
      %c0_18 = arith.constant 0 : index
      %18 = vector.load %arg8[%c0_17, %c0_18] : memref<1x256xf32, #tpu.memory_space<vmem>>, vector<1x256xf32>
      %c0_19 = arith.constant 0 : index
      %19 = memref.load %arg4[%c0_19] : memref<98xf32, #tpu.memory_space<smem>>
      %c1 = arith.constant 1 : index
      %20 = memref.load %arg4[%c1] : memref<98xf32, #tpu.memory_space<smem>>
      %c2 = arith.constant 2 : index
      %21 = memref.load %arg4[%c2] : memref<98xf32, #tpu.memory_space<smem>>
      %c3 = arith.constant 3 : index
      %22 = memref.load %arg4[%c3] : memref<98xf32, #tpu.memory_space<smem>>
      %c4 = arith.constant 4 : index
      %23 = memref.load %arg4[%c4] : memref<98xf32, #tpu.memory_space<smem>>
      %c5 = arith.constant 5 : index
      %24 = memref.load %arg4[%c5] : memref<98xf32, #tpu.memory_space<smem>>
      %c6 = arith.constant 6 : index
      %25 = memref.load %arg4[%c6] : memref<98xf32, #tpu.memory_space<smem>>
      %c7 = arith.constant 7 : index
      %26 = memref.load %arg4[%c7] : memref<98xf32, #tpu.memory_space<smem>>
      %c8 = arith.constant 8 : index
      %27 = memref.load %arg4[%c8] : memref<98xf32, #tpu.memory_space<smem>>
      %c9 = arith.constant 9 : index
      %28 = memref.load %arg4[%c9] : memref<98xf32, #tpu.memory_space<smem>>
      %c10 = arith.constant 10 : index
      %29 = memref.load %arg4[%c10] : memref<98xf32, #tpu.memory_space<smem>>
      %c11 = arith.constant 11 : index
      %30 = memref.load %arg4[%c11] : memref<98xf32, #tpu.memory_space<smem>>
      %c12 = arith.constant 12 : index
      %31 = memref.load %arg4[%c12] : memref<98xf32, #tpu.memory_space<smem>>
      %c13 = arith.constant 13 : index
      %32 = memref.load %arg4[%c13] : memref<98xf32, #tpu.memory_space<smem>>
      %c14 = arith.constant 14 : index
      %33 = memref.load %arg4[%c14] : memref<98xf32, #tpu.memory_space<smem>>
      %c15 = arith.constant 15 : index
      %34 = memref.load %arg4[%c15] : memref<98xf32, #tpu.memory_space<smem>>
      %c16 = arith.constant 16 : index
      %35 = memref.load %arg4[%c16] : memref<98xf32, #tpu.memory_space<smem>>
      %c17 = arith.constant 17 : index
      %36 = memref.load %arg4[%c17] : memref<98xf32, #tpu.memory_space<smem>>
      %c18 = arith.constant 18 : index
      %37 = memref.load %arg4[%c18] : memref<98xf32, #tpu.memory_space<smem>>
      %c19 = arith.constant 19 : index
      %38 = memref.load %arg4[%c19] : memref<98xf32, #tpu.memory_space<smem>>
      %c20 = arith.constant 20 : index
      %39 = memref.load %arg4[%c20] : memref<98xf32, #tpu.memory_space<smem>>
      %c21 = arith.constant 21 : index
      %40 = memref.load %arg4[%c21] : memref<98xf32, #tpu.memory_space<smem>>
      %c22 = arith.constant 22 : index
      %41 = memref.load %arg4[%c22] : memref<98xf32, #tpu.memory_space<smem>>
      %c23 = arith.constant 23 : index
      %42 = memref.load %arg4[%c23] : memref<98xf32, #tpu.memory_space<smem>>
      %c24 = arith.constant 24 : index
      %43 = memref.load %arg4[%c24] : memref<98xf32, #tpu.memory_space<smem>>
      %c25 = arith.constant 25 : index
      %44 = memref.load %arg4[%c25] : memref<98xf32, #tpu.memory_space<smem>>
      %c26 = arith.constant 26 : index
      %45 = memref.load %arg4[%c26] : memref<98xf32, #tpu.memory_space<smem>>
      %c27 = arith.constant 27 : index
      %46 = memref.load %arg4[%c27] : memref<98xf32, #tpu.memory_space<smem>>
      %c28 = arith.constant 28 : index
      %47 = memref.load %arg4[%c28] : memref<98xf32, #tpu.memory_space<smem>>
      %c29 = arith.constant 29 : index
      %48 = memref.load %arg4[%c29] : memref<98xf32, #tpu.memory_space<smem>>
      %c30 = arith.constant 30 : index
      %49 = memref.load %arg4[%c30] : memref<98xf32, #tpu.memory_space<smem>>
      %c31 = arith.constant 31 : index
      %50 = memref.load %arg4[%c31] : memref<98xf32, #tpu.memory_space<smem>>
      %c32 = arith.constant 32 : index
      %51 = memref.load %arg4[%c32] : memref<98xf32, #tpu.memory_space<smem>>
      %c33 = arith.constant 33 : index
      %52 = memref.load %arg4[%c33] : memref<98xf32, #tpu.memory_space<smem>>
      %c34 = arith.constant 34 : index
      %53 = memref.load %arg4[%c34] : memref<98xf32, #tpu.memory_space<smem>>
      %c35 = arith.constant 35 : index
      %54 = memref.load %arg4[%c35] : memref<98xf32, #tpu.memory_space<smem>>
      %c36 = arith.constant 36 : index
      %55 = memref.load %arg4[%c36] : memref<98xf32, #tpu.memory_space<smem>>
      %c37 = arith.constant 37 : index
      %56 = memref.load %arg4[%c37] : memref<98xf32, #tpu.memory_space<smem>>
      %c38 = arith.constant 38 : index
      %57 = memref.load %arg4[%c38] : memref<98xf32, #tpu.memory_space<smem>>
      %c39 = arith.constant 39 : index
      %58 = memref.load %arg4[%c39] : memref<98xf32, #tpu.memory_space<smem>>
      %c40 = arith.constant 40 : index
      %59 = memref.load %arg4[%c40] : memref<98xf32, #tpu.memory_space<smem>>
      %c41 = arith.constant 41 : index
      %60 = memref.load %arg4[%c41] : memref<98xf32, #tpu.memory_space<smem>>
      %c42 = arith.constant 42 : index
      %61 = memref.load %arg4[%c42] : memref<98xf32, #tpu.memory_space<smem>>
      %c43 = arith.constant 43 : index
      %62 = memref.load %arg4[%c43] : memref<98xf32, #tpu.memory_space<smem>>
      %c44 = arith.constant 44 : index
      %63 = memref.load %arg4[%c44] : memref<98xf32, #tpu.memory_space<smem>>
      %c45 = arith.constant 45 : index
      %64 = memref.load %arg4[%c45] : memref<98xf32, #tpu.memory_space<smem>>
      %c46 = arith.constant 46 : index
      %65 = memref.load %arg4[%c46] : memref<98xf32, #tpu.memory_space<smem>>
      %c47 = arith.constant 47 : index
      %66 = memref.load %arg4[%c47] : memref<98xf32, #tpu.memory_space<smem>>
      %c48 = arith.constant 48 : index
      %67 = memref.load %arg4[%c48] : memref<98xf32, #tpu.memory_space<smem>>
      %c49 = arith.constant 49 : index
      %68 = memref.load %arg4[%c49] : memref<98xf32, #tpu.memory_space<smem>>
      %c50 = arith.constant 50 : index
      %69 = memref.load %arg4[%c50] : memref<98xf32, #tpu.memory_space<smem>>
      %c51 = arith.constant 51 : index
      %70 = memref.load %arg4[%c51] : memref<98xf32, #tpu.memory_space<smem>>
      %c52 = arith.constant 52 : index
      %71 = memref.load %arg4[%c52] : memref<98xf32, #tpu.memory_space<smem>>
      %c53 = arith.constant 53 : index
      %72 = memref.load %arg4[%c53] : memref<98xf32, #tpu.memory_space<smem>>
      %c54 = arith.constant 54 : index
      %73 = memref.load %arg4[%c54] : memref<98xf32, #tpu.memory_space<smem>>
      %c55 = arith.constant 55 : index
      %74 = memref.load %arg4[%c55] : memref<98xf32, #tpu.memory_space<smem>>
      %c56 = arith.constant 56 : index
      %75 = memref.load %arg4[%c56] : memref<98xf32, #tpu.memory_space<smem>>
      %c57 = arith.constant 57 : index
      %76 = memref.load %arg4[%c57] : memref<98xf32, #tpu.memory_space<smem>>
      %c58 = arith.constant 58 : index
      %77 = memref.load %arg4[%c58] : memref<98xf32, #tpu.memory_space<smem>>
      %c59 = arith.constant 59 : index
      %78 = memref.load %arg4[%c59] : memref<98xf32, #tpu.memory_space<smem>>
      %c60 = arith.constant 60 : index
      %79 = memref.load %arg4[%c60] : memref<98xf32, #tpu.memory_space<smem>>
      %c61 = arith.constant 61 : index
      %80 = memref.load %arg4[%c61] : memref<98xf32, #tpu.memory_space<smem>>
      %c62 = arith.constant 62 : index
      %81 = memref.load %arg4[%c62] : memref<98xf32, #tpu.memory_space<smem>>
      %c63 = arith.constant 63 : index
      %82 = memref.load %arg4[%c63] : memref<98xf32, #tpu.memory_space<smem>>
      %c64 = arith.constant 64 : index
      %83 = memref.load %arg4[%c64] : memref<98xf32, #tpu.memory_space<smem>>
      %c65 = arith.constant 65 : index
      %84 = memref.load %arg4[%c65] : memref<98xf32, #tpu.memory_space<smem>>
      %c66 = arith.constant 66 : index
      %85 = memref.load %arg4[%c66] : memref<98xf32, #tpu.memory_space<smem>>
      %c67 = arith.constant 67 : index
      %86 = memref.load %arg4[%c67] : memref<98xf32, #tpu.memory_space<smem>>
      %c68 = arith.constant 68 : index
      %87 = memref.load %arg4[%c68] : memref<98xf32, #tpu.memory_space<smem>>
      %c69 = arith.constant 69 : index
      %88 = memref.load %arg4[%c69] : memref<98xf32, #tpu.memory_space<smem>>
      %c70 = arith.constant 70 : index
      %89 = memref.load %arg4[%c70] : memref<98xf32, #tpu.memory_space<smem>>
      %c71 = arith.constant 71 : index
      %90 = memref.load %arg4[%c71] : memref<98xf32, #tpu.memory_space<smem>>
      %c72 = arith.constant 72 : index
      %91 = memref.load %arg4[%c72] : memref<98xf32, #tpu.memory_space<smem>>
      %c73 = arith.constant 73 : index
      %92 = memref.load %arg4[%c73] : memref<98xf32, #tpu.memory_space<smem>>
      %c74 = arith.constant 74 : index
      %93 = memref.load %arg4[%c74] : memref<98xf32, #tpu.memory_space<smem>>
      %c75 = arith.constant 75 : index
      %94 = memref.load %arg4[%c75] : memref<98xf32, #tpu.memory_space<smem>>
      %c76 = arith.constant 76 : index
      %95 = memref.load %arg4[%c76] : memref<98xf32, #tpu.memory_space<smem>>
      %c77 = arith.constant 77 : index
      %96 = memref.load %arg4[%c77] : memref<98xf32, #tpu.memory_space<smem>>
      %c78 = arith.constant 78 : index
      %97 = memref.load %arg4[%c78] : memref<98xf32, #tpu.memory_space<smem>>
      %c79 = arith.constant 79 : index
      %98 = memref.load %arg4[%c79] : memref<98xf32, #tpu.memory_space<smem>>
      %c80 = arith.constant 80 : index
      %99 = memref.load %arg4[%c80] : memref<98xf32, #tpu.memory_space<smem>>
      %c81 = arith.constant 81 : index
      %100 = memref.load %arg4[%c81] : memref<98xf32, #tpu.memory_space<smem>>
      %c82 = arith.constant 82 : index
      %101 = memref.load %arg4[%c82] : memref<98xf32, #tpu.memory_space<smem>>
      %c83 = arith.constant 83 : index
      %102 = memref.load %arg4[%c83] : memref<98xf32, #tpu.memory_space<smem>>
      %c84 = arith.constant 84 : index
      %103 = memref.load %arg4[%c84] : memref<98xf32, #tpu.memory_space<smem>>
      %c85 = arith.constant 85 : index
      %104 = memref.load %arg4[%c85] : memref<98xf32, #tpu.memory_space<smem>>
      %c86 = arith.constant 86 : index
      %105 = memref.load %arg4[%c86] : memref<98xf32, #tpu.memory_space<smem>>
      %c87 = arith.constant 87 : index
      %106 = memref.load %arg4[%c87] : memref<98xf32, #tpu.memory_space<smem>>
      %c88 = arith.constant 88 : index
      %107 = memref.load %arg4[%c88] : memref<98xf32, #tpu.memory_space<smem>>
      %c89 = arith.constant 89 : index
      %108 = memref.load %arg4[%c89] : memref<98xf32, #tpu.memory_space<smem>>
      %c90 = arith.constant 90 : index
      %109 = memref.load %arg4[%c90] : memref<98xf32, #tpu.memory_space<smem>>
      %c91 = arith.constant 91 : index
      %110 = memref.load %arg4[%c91] : memref<98xf32, #tpu.memory_space<smem>>
      %c92 = arith.constant 92 : index
      %111 = memref.load %arg4[%c92] : memref<98xf32, #tpu.memory_space<smem>>
      %c93 = arith.constant 93 : index
      %112 = memref.load %arg4[%c93] : memref<98xf32, #tpu.memory_space<smem>>
      %c94 = arith.constant 94 : index
      %113 = memref.load %arg4[%c94] : memref<98xf32, #tpu.memory_space<smem>>
      %c95 = arith.constant 95 : index
      %114 = memref.load %arg4[%c95] : memref<98xf32, #tpu.memory_space<smem>>
      %c96 = arith.constant 96 : index
      %115 = memref.load %arg4[%c96] : memref<98xf32, #tpu.memory_space<smem>>
      %c97 = arith.constant 97 : index
      %116 = memref.load %arg4[%c97] : memref<98xf32, #tpu.memory_space<smem>>
      %c0_20 = arith.constant 0 : index
      %117 = memref.load %arg5[%c0_20] : memref<1xf32, #tpu.memory_space<smem>>
      %c0_21 = arith.constant 0 : index
      %c0_22 = arith.constant 0 : index
      %118 = vector.load %arg3[%c0_21, %c0_22] : memref<12x256xf32, #tpu.memory_space<vmem>>, vector<1x256xf32>
      %c6_23 = arith.constant 6 : index
      %c0_24 = arith.constant 0 : index
      %119 = vector.load %arg3[%c6_23, %c0_24] : memref<12x256xf32, #tpu.memory_space<vmem>>, vector<1x256xf32>
      %c1_25 = arith.constant 1 : index
      %c0_26 = arith.constant 0 : index
      %120 = vector.load %arg3[%c1_25, %c0_26] : memref<12x256xf32, #tpu.memory_space<vmem>>, vector<1x256xf32>
      %c7_27 = arith.constant 7 : index
      %c0_28 = arith.constant 0 : index
      %121 = vector.load %arg3[%c7_27, %c0_28] : memref<12x256xf32, #tpu.memory_space<vmem>>, vector<1x256xf32>
      %c2_29 = arith.constant 2 : index
      %c0_30 = arith.constant 0 : index
      %122 = vector.load %arg3[%c2_29, %c0_30] : memref<12x256xf32, #tpu.memory_space<vmem>>, vector<1x256xf32>
      %c8_31 = arith.constant 8 : index
      %c0_32 = arith.constant 0 : index
      %123 = vector.load %arg3[%c8_31, %c0_32] : memref<12x256xf32, #tpu.memory_space<vmem>>, vector<1x256xf32>
      %c3_33 = arith.constant 3 : index
      %c0_34 = arith.constant 0 : index
      %124 = vector.load %arg3[%c3_33, %c0_34] : memref<12x256xf32, #tpu.memory_space<vmem>>, vector<1x256xf32>
      %c9_35 = arith.constant 9 : index
      %c0_36 = arith.constant 0 : index
      %125 = vector.load %arg3[%c9_35, %c0_36] : memref<12x256xf32, #tpu.memory_space<vmem>>, vector<1x256xf32>
      %c4_37 = arith.constant 4 : index
      %c0_38 = arith.constant 0 : index
      %126 = vector.load %arg3[%c4_37, %c0_38] : memref<12x256xf32, #tpu.memory_space<vmem>>, vector<1x256xf32>
      %c10_39 = arith.constant 10 : index
      %c0_40 = arith.constant 0 : index
      %127 = vector.load %arg3[%c10_39, %c0_40] : memref<12x256xf32, #tpu.memory_space<vmem>>, vector<1x256xf32>
      %c5_41 = arith.constant 5 : index
      %c0_42 = arith.constant 0 : index
      %128 = vector.load %arg3[%c5_41, %c0_42] : memref<12x256xf32, #tpu.memory_space<vmem>>, vector<1x256xf32>
      %c11_43 = arith.constant 11 : index
      %c0_44 = arith.constant 0 : index
      %129 = vector.load %arg3[%c11_43, %c0_44] : memref<12x256xf32, #tpu.memory_space<vmem>>, vector<1x256xf32>
      %c3_i32 = arith.constant 3 : i32
      %130 = tpu.dynamic_rotate %17 by %c3_i32 dim 1 : vector<1x256xf32>, i32 -> vector<1x256xf32>
      %131 = arith.mulf %130, %118 : vector<1x256xf32>
      %c3_i32_45 = arith.constant 3 : i32
      %132 = tpu.dynamic_rotate %18 by %c3_i32_45 dim 1 : vector<1x256xf32>, i32 -> vector<1x256xf32>
      %133 = arith.mulf %132, %118 : vector<1x256xf32>
      %134 = vector.broadcast %19 : f32 to vector<1x256xf32>
      %135 = arith.mulf %134, %131 : vector<1x256xf32>
      %136 = vector.broadcast %68 : f32 to vector<1x256xf32>
      %137 = arith.mulf %136, %133 : vector<1x256xf32>
      %138 = arith.addf %135, %137 : vector<1x256xf32>
      %139 = vector.broadcast %26 : f32 to vector<1x256xf32>
      %140 = arith.mulf %139, %131 : vector<1x256xf32>
      %141 = vector.broadcast %75 : f32 to vector<1x256xf32>
      %142 = arith.mulf %141, %133 : vector<1x256xf32>
      %143 = arith.addf %140, %142 : vector<1x256xf32>
      %144 = vector.broadcast %33 : f32 to vector<1x256xf32>
      %145 = arith.mulf %144, %131 : vector<1x256xf32>
      %146 = vector.broadcast %82 : f32 to vector<1x256xf32>
      %147 = arith.mulf %146, %133 : vector<1x256xf32>
      %148 = arith.addf %145, %147 : vector<1x256xf32>
      %149 = vector.broadcast %40 : f32 to vector<1x256xf32>
      %150 = arith.mulf %149, %131 : vector<1x256xf32>
      %151 = vector.broadcast %89 : f32 to vector<1x256xf32>
      %152 = arith.mulf %151, %133 : vector<1x256xf32>
      %153 = arith.addf %150, %152 : vector<1x256xf32>
      %154 = vector.broadcast %47 : f32 to vector<1x256xf32>
      %155 = arith.mulf %154, %131 : vector<1x256xf32>
      %156 = vector.broadcast %96 : f32 to vector<1x256xf32>
      %157 = arith.mulf %156, %133 : vector<1x256xf32>
      %158 = arith.addf %155, %157 : vector<1x256xf32>
      %159 = vector.broadcast %54 : f32 to vector<1x256xf32>
      %160 = arith.mulf %159, %131 : vector<1x256xf32>
      %161 = vector.broadcast %103 : f32 to vector<1x256xf32>
      %162 = arith.mulf %161, %133 : vector<1x256xf32>
      %163 = arith.addf %160, %162 : vector<1x256xf32>
      %164 = vector.broadcast %61 : f32 to vector<1x256xf32>
      %165 = arith.mulf %164, %131 : vector<1x256xf32>
      %166 = vector.broadcast %110 : f32 to vector<1x256xf32>
      %167 = arith.mulf %166, %133 : vector<1x256xf32>
      %168 = arith.addf %165, %167 : vector<1x256xf32>
      %c2_i32 = arith.constant 2 : i32
      %169 = tpu.dynamic_rotate %17 by %c2_i32 dim 1 : vector<1x256xf32>, i32 -> vector<1x256xf32>
      %170 = arith.mulf %169, %120 : vector<1x256xf32>
      %c2_i32_46 = arith.constant 2 : i32
      %171 = tpu.dynamic_rotate %18 by %c2_i32_46 dim 1 : vector<1x256xf32>, i32 -> vector<1x256xf32>
      %172 = arith.mulf %171, %120 : vector<1x256xf32>
      %173 = vector.broadcast %20 : f32 to vector<1x256xf32>
      %174 = arith.mulf %173, %170 : vector<1x256xf32>
      %175 = vector.broadcast %69 : f32 to vector<1x256xf32>
      %176 = arith.mulf %175, %172 : vector<1x256xf32>
      %177 = arith.addf %174, %176 : vector<1x256xf32>
      %178 = arith.addf %138, %177 : vector<1x256xf32>
      %179 = vector.broadcast %27 : f32 to vector<1x256xf32>
      %180 = arith.mulf %179, %170 : vector<1x256xf32>
      %181 = vector.broadcast %76 : f32 to vector<1x256xf32>
      %182 = arith.mulf %181, %172 : vector<1x256xf32>
      %183 = arith.addf %180, %182 : vector<1x256xf32>
      %184 = arith.addf %143, %183 : vector<1x256xf32>
      %185 = vector.broadcast %34 : f32 to vector<1x256xf32>
      %186 = arith.mulf %185, %170 : vector<1x256xf32>
      %187 = vector.broadcast %83 : f32 to vector<1x256xf32>
      %188 = arith.mulf %187, %172 : vector<1x256xf32>
      %189 = arith.addf %186, %188 : vector<1x256xf32>
      %190 = arith.addf %148, %189 : vector<1x256xf32>
      %191 = vector.broadcast %41 : f32 to vector<1x256xf32>
      %192 = arith.mulf %191, %170 : vector<1x256xf32>
      %193 = vector.broadcast %90 : f32 to vector<1x256xf32>
      %194 = arith.mulf %193, %172 : vector<1x256xf32>
      %195 = arith.addf %192, %194 : vector<1x256xf32>
      %196 = arith.addf %153, %195 : vector<1x256xf32>
      %197 = vector.broadcast %48 : f32 to vector<1x256xf32>
      %198 = arith.mulf %197, %170 : vector<1x256xf32>
      %199 = vector.broadcast %97 : f32 to vector<1x256xf32>
      %200 = arith.mulf %199, %172 : vector<1x256xf32>
      %201 = arith.addf %198, %200 : vector<1x256xf32>
      %202 = arith.addf %158, %201 : vector<1x256xf32>
      %203 = vector.broadcast %55 : f32 to vector<1x256xf32>
      %204 = arith.mulf %203, %170 : vector<1x256xf32>
      %205 = vector.broadcast %104 : f32 to vector<1x256xf32>
      %206 = arith.mulf %205, %172 : vector<1x256xf32>
      %207 = arith.addf %204, %206 : vector<1x256xf32>
      %208 = arith.addf %163, %207 : vector<1x256xf32>
      %209 = vector.broadcast %62 : f32 to vector<1x256xf32>
      %210 = arith.mulf %209, %170 : vector<1x256xf32>
      %211 = vector.broadcast %111 : f32 to vector<1x256xf32>
      %212 = arith.mulf %211, %172 : vector<1x256xf32>
      %213 = arith.addf %210, %212 : vector<1x256xf32>
      %214 = arith.addf %168, %213 : vector<1x256xf32>
      %c1_i32 = arith.constant 1 : i32
      %215 = tpu.dynamic_rotate %17 by %c1_i32 dim 1 : vector<1x256xf32>, i32 -> vector<1x256xf32>
      %216 = arith.mulf %215, %122 : vector<1x256xf32>
      %c1_i32_47 = arith.constant 1 : i32
      %217 = tpu.dynamic_rotate %18 by %c1_i32_47 dim 1 : vector<1x256xf32>, i32 -> vector<1x256xf32>
      %218 = arith.mulf %217, %122 : vector<1x256xf32>
      %219 = vector.broadcast %21 : f32 to vector<1x256xf32>
      %220 = arith.mulf %219, %216 : vector<1x256xf32>
      %221 = vector.broadcast %70 : f32 to vector<1x256xf32>
      %222 = arith.mulf %221, %218 : vector<1x256xf32>
      %223 = arith.addf %220, %222 : vector<1x256xf32>
      %224 = arith.addf %178, %223 : vector<1x256xf32>
      %225 = vector.broadcast %28 : f32 to vector<1x256xf32>
      %226 = arith.mulf %225, %216 : vector<1x256xf32>
      %227 = vector.broadcast %77 : f32 to vector<1x256xf32>
      %228 = arith.mulf %227, %218 : vector<1x256xf32>
      %229 = arith.addf %226, %228 : vector<1x256xf32>
      %230 = arith.addf %184, %229 : vector<1x256xf32>
      %231 = vector.broadcast %35 : f32 to vector<1x256xf32>
      %232 = arith.mulf %231, %216 : vector<1x256xf32>
      %233 = vector.broadcast %84 : f32 to vector<1x256xf32>
      %234 = arith.mulf %233, %218 : vector<1x256xf32>
      %235 = arith.addf %232, %234 : vector<1x256xf32>
      %236 = arith.addf %190, %235 : vector<1x256xf32>
      %237 = vector.broadcast %42 : f32 to vector<1x256xf32>
      %238 = arith.mulf %237, %216 : vector<1x256xf32>
      %239 = vector.broadcast %91 : f32 to vector<1x256xf32>
      %240 = arith.mulf %239, %218 : vector<1x256xf32>
      %241 = arith.addf %238, %240 : vector<1x256xf32>
      %242 = arith.addf %196, %241 : vector<1x256xf32>
      %243 = vector.broadcast %49 : f32 to vector<1x256xf32>
      %244 = arith.mulf %243, %216 : vector<1x256xf32>
      %245 = vector.broadcast %98 : f32 to vector<1x256xf32>
      %246 = arith.mulf %245, %218 : vector<1x256xf32>
      %247 = arith.addf %244, %246 : vector<1x256xf32>
      %248 = arith.addf %202, %247 : vector<1x256xf32>
      %249 = vector.broadcast %56 : f32 to vector<1x256xf32>
      %250 = arith.mulf %249, %216 : vector<1x256xf32>
      %251 = vector.broadcast %105 : f32 to vector<1x256xf32>
      %252 = arith.mulf %251, %218 : vector<1x256xf32>
      %253 = arith.addf %250, %252 : vector<1x256xf32>
      %254 = arith.addf %208, %253 : vector<1x256xf32>
      %255 = vector.broadcast %63 : f32 to vector<1x256xf32>
      %256 = arith.mulf %255, %216 : vector<1x256xf32>
      %257 = vector.broadcast %112 : f32 to vector<1x256xf32>
      %258 = arith.mulf %257, %218 : vector<1x256xf32>
      %259 = arith.addf %256, %258 : vector<1x256xf32>
      %260 = arith.addf %214, %259 : vector<1x256xf32>
      %261 = vector.broadcast %22 : f32 to vector<1x256xf32>
      %262 = arith.mulf %261, %17 : vector<1x256xf32>
      %263 = vector.broadcast %71 : f32 to vector<1x256xf32>
      %264 = arith.mulf %263, %18 : vector<1x256xf32>
      %265 = arith.addf %262, %264 : vector<1x256xf32>
      %266 = arith.addf %224, %265 : vector<1x256xf32>
      %267 = vector.broadcast %29 : f32 to vector<1x256xf32>
      %268 = arith.mulf %267, %17 : vector<1x256xf32>
      %269 = vector.broadcast %78 : f32 to vector<1x256xf32>
      %270 = arith.mulf %269, %18 : vector<1x256xf32>
      %271 = arith.addf %268, %270 : vector<1x256xf32>
      %272 = arith.addf %230, %271 : vector<1x256xf32>
      %273 = vector.broadcast %36 : f32 to vector<1x256xf32>
      %274 = arith.mulf %273, %17 : vector<1x256xf32>
      %275 = vector.broadcast %85 : f32 to vector<1x256xf32>
      %276 = arith.mulf %275, %18 : vector<1x256xf32>
      %277 = arith.addf %274, %276 : vector<1x256xf32>
      %278 = arith.addf %236, %277 : vector<1x256xf32>
      %279 = vector.broadcast %43 : f32 to vector<1x256xf32>
      %280 = arith.mulf %279, %17 : vector<1x256xf32>
      %281 = vector.broadcast %92 : f32 to vector<1x256xf32>
      %282 = arith.mulf %281, %18 : vector<1x256xf32>
      %283 = arith.addf %280, %282 : vector<1x256xf32>
      %284 = arith.addf %242, %283 : vector<1x256xf32>
      %285 = vector.broadcast %50 : f32 to vector<1x256xf32>
      %286 = arith.mulf %285, %17 : vector<1x256xf32>
      %287 = vector.broadcast %99 : f32 to vector<1x256xf32>
      %288 = arith.mulf %287, %18 : vector<1x256xf32>
      %289 = arith.addf %286, %288 : vector<1x256xf32>
      %290 = arith.addf %248, %289 : vector<1x256xf32>
      %291 = vector.broadcast %57 : f32 to vector<1x256xf32>
      %292 = arith.mulf %291, %17 : vector<1x256xf32>
      %293 = vector.broadcast %106 : f32 to vector<1x256xf32>
      %294 = arith.mulf %293, %18 : vector<1x256xf32>
      %295 = arith.addf %292, %294 : vector<1x256xf32>
      %296 = arith.addf %254, %295 : vector<1x256xf32>
      %297 = vector.broadcast %64 : f32 to vector<1x256xf32>
      %298 = arith.mulf %297, %17 : vector<1x256xf32>
      %299 = vector.broadcast %113 : f32 to vector<1x256xf32>
      %300 = arith.mulf %299, %18 : vector<1x256xf32>
      %301 = arith.addf %298, %300 : vector<1x256xf32>
      %302 = arith.addf %260, %301 : vector<1x256xf32>
      %c255_i32 = arith.constant 255 : i32
      %303 = tpu.dynamic_rotate %17 by %c255_i32 dim 1 : vector<1x256xf32>, i32 -> vector<1x256xf32>
      %304 = arith.mulf %303, %124 : vector<1x256xf32>
      %c255_i32_48 = arith.constant 255 : i32
      %305 = tpu.dynamic_rotate %18 by %c255_i32_48 dim 1 : vector<1x256xf32>, i32 -> vector<1x256xf32>
      %306 = arith.mulf %305, %124 : vector<1x256xf32>
      %307 = vector.broadcast %23 : f32 to vector<1x256xf32>
      %308 = arith.mulf %307, %304 : vector<1x256xf32>
      %309 = vector.broadcast %72 : f32 to vector<1x256xf32>
      %310 = arith.mulf %309, %306 : vector<1x256xf32>
      %311 = arith.addf %308, %310 : vector<1x256xf32>
      %312 = arith.addf %266, %311 : vector<1x256xf32>
      %313 = vector.broadcast %30 : f32 to vector<1x256xf32>
      %314 = arith.mulf %313, %304 : vector<1x256xf32>
      %315 = vector.broadcast %79 : f32 to vector<1x256xf32>
      %316 = arith.mulf %315, %306 : vector<1x256xf32>
      %317 = arith.addf %314, %316 : vector<1x256xf32>
      %318 = arith.addf %272, %317 : vector<1x256xf32>
      %319 = vector.broadcast %37 : f32 to vector<1x256xf32>
      %320 = arith.mulf %319, %304 : vector<1x256xf32>
      %321 = vector.broadcast %86 : f32 to vector<1x256xf32>
      %322 = arith.mulf %321, %306 : vector<1x256xf32>
      %323 = arith.addf %320, %322 : vector<1x256xf32>
      %324 = arith.addf %278, %323 : vector<1x256xf32>
      %325 = vector.broadcast %44 : f32 to vector<1x256xf32>
      %326 = arith.mulf %325, %304 : vector<1x256xf32>
      %327 = vector.broadcast %93 : f32 to vector<1x256xf32>
      %328 = arith.mulf %327, %306 : vector<1x256xf32>
      %329 = arith.addf %326, %328 : vector<1x256xf32>
      %330 = arith.addf %284, %329 : vector<1x256xf32>
      %331 = vector.broadcast %51 : f32 to vector<1x256xf32>
      %332 = arith.mulf %331, %304 : vector<1x256xf32>
      %333 = vector.broadcast %100 : f32 to vector<1x256xf32>
      %334 = arith.mulf %333, %306 : vector<1x256xf32>
      %335 = arith.addf %332, %334 : vector<1x256xf32>
      %336 = arith.addf %290, %335 : vector<1x256xf32>
      %337 = vector.broadcast %58 : f32 to vector<1x256xf32>
      %338 = arith.mulf %337, %304 : vector<1x256xf32>
      %339 = vector.broadcast %107 : f32 to vector<1x256xf32>
      %340 = arith.mulf %339, %306 : vector<1x256xf32>
      %341 = arith.addf %338, %340 : vector<1x256xf32>
      %342 = arith.addf %296, %341 : vector<1x256xf32>
      %343 = vector.broadcast %65 : f32 to vector<1x256xf32>
      %344 = arith.mulf %343, %304 : vector<1x256xf32>
      %345 = vector.broadcast %114 : f32 to vector<1x256xf32>
      %346 = arith.mulf %345, %306 : vector<1x256xf32>
      %347 = arith.addf %344, %346 : vector<1x256xf32>
      %348 = arith.addf %302, %347 : vector<1x256xf32>
      %c254_i32 = arith.constant 254 : i32
      %349 = tpu.dynamic_rotate %17 by %c254_i32 dim 1 : vector<1x256xf32>, i32 -> vector<1x256xf32>
      %350 = arith.mulf %349, %126 : vector<1x256xf32>
      %c254_i32_49 = arith.constant 254 : i32
      %351 = tpu.dynamic_rotate %18 by %c254_i32_49 dim 1 : vector<1x256xf32>, i32 -> vector<1x256xf32>
      %352 = arith.mulf %351, %126 : vector<1x256xf32>
      %353 = vector.broadcast %24 : f32 to vector<1x256xf32>
      %354 = arith.mulf %353, %350 : vector<1x256xf32>
      %355 = vector.broadcast %73 : f32 to vector<1x256xf32>
      %356 = arith.mulf %355, %352 : vector<1x256xf32>
      %357 = arith.addf %354, %356 : vector<1x256xf32>
      %358 = arith.addf %312, %357 : vector<1x256xf32>
      %359 = vector.broadcast %31 : f32 to vector<1x256xf32>
      %360 = arith.mulf %359, %350 : vector<1x256xf32>
      %361 = vector.broadcast %80 : f32 to vector<1x256xf32>
      %362 = arith.mulf %361, %352 : vector<1x256xf32>
      %363 = arith.addf %360, %362 : vector<1x256xf32>
      %364 = arith.addf %318, %363 : vector<1x256xf32>
      %365 = vector.broadcast %38 : f32 to vector<1x256xf32>
      %366 = arith.mulf %365, %350 : vector<1x256xf32>
      %367 = vector.broadcast %87 : f32 to vector<1x256xf32>
      %368 = arith.mulf %367, %352 : vector<1x256xf32>
      %369 = arith.addf %366, %368 : vector<1x256xf32>
      %370 = arith.addf %324, %369 : vector<1x256xf32>
      %371 = vector.broadcast %45 : f32 to vector<1x256xf32>
      %372 = arith.mulf %371, %350 : vector<1x256xf32>
      %373 = vector.broadcast %94 : f32 to vector<1x256xf32>
      %374 = arith.mulf %373, %352 : vector<1x256xf32>
      %375 = arith.addf %372, %374 : vector<1x256xf32>
      %376 = arith.addf %330, %375 : vector<1x256xf32>
      %377 = vector.broadcast %52 : f32 to vector<1x256xf32>
      %378 = arith.mulf %377, %350 : vector<1x256xf32>
      %379 = vector.broadcast %101 : f32 to vector<1x256xf32>
      %380 = arith.mulf %379, %352 : vector<1x256xf32>
      %381 = arith.addf %378, %380 : vector<1x256xf32>
      %382 = arith.addf %336, %381 : vector<1x256xf32>
      %383 = vector.broadcast %59 : f32 to vector<1x256xf32>
      %384 = arith.mulf %383, %350 : vector<1x256xf32>
      %385 = vector.broadcast %108 : f32 to vector<1x256xf32>
      %386 = arith.mulf %385, %352 : vector<1x256xf32>
      %387 = arith.addf %384, %386 : vector<1x256xf32>
      %388 = arith.addf %342, %387 : vector<1x256xf32>
      %389 = vector.broadcast %66 : f32 to vector<1x256xf32>
      %390 = arith.mulf %389, %350 : vector<1x256xf32>
      %391 = vector.broadcast %115 : f32 to vector<1x256xf32>
      %392 = arith.mulf %391, %352 : vector<1x256xf32>
      %393 = arith.addf %390, %392 : vector<1x256xf32>
      %394 = arith.addf %348, %393 : vector<1x256xf32>
      %c253_i32 = arith.constant 253 : i32
      %395 = tpu.dynamic_rotate %17 by %c253_i32 dim 1 : vector<1x256xf32>, i32 -> vector<1x256xf32>
      %396 = arith.mulf %395, %128 : vector<1x256xf32>
      %c253_i32_50 = arith.constant 253 : i32
      %397 = tpu.dynamic_rotate %18 by %c253_i32_50 dim 1 : vector<1x256xf32>, i32 -> vector<1x256xf32>
      %398 = arith.mulf %397, %128 : vector<1x256xf32>
      %399 = vector.broadcast %25 : f32 to vector<1x256xf32>
      %400 = arith.mulf %399, %396 : vector<1x256xf32>
      %401 = vector.broadcast %74 : f32 to vector<1x256xf32>
      %402 = arith.mulf %401, %398 : vector<1x256xf32>
      %403 = arith.addf %400, %402 : vector<1x256xf32>
      %404 = arith.addf %358, %403 : vector<1x256xf32>
      %405 = vector.broadcast %32 : f32 to vector<1x256xf32>
      %406 = arith.mulf %405, %396 : vector<1x256xf32>
      %407 = vector.broadcast %81 : f32 to vector<1x256xf32>
      %408 = arith.mulf %407, %398 : vector<1x256xf32>
      %409 = arith.addf %406, %408 : vector<1x256xf32>
      %410 = arith.addf %364, %409 : vector<1x256xf32>
      %411 = vector.broadcast %39 : f32 to vector<1x256xf32>
      %412 = arith.mulf %411, %396 : vector<1x256xf32>
      %413 = vector.broadcast %88 : f32 to vector<1x256xf32>
      %414 = arith.mulf %413, %398 : vector<1x256xf32>
      %415 = arith.addf %412, %414 : vector<1x256xf32>
      %416 = arith.addf %370, %415 : vector<1x256xf32>
      %417 = vector.broadcast %46 : f32 to vector<1x256xf32>
      %418 = arith.mulf %417, %396 : vector<1x256xf32>
      %419 = vector.broadcast %95 : f32 to vector<1x256xf32>
      %420 = arith.mulf %419, %398 : vector<1x256xf32>
      %421 = arith.addf %418, %420 : vector<1x256xf32>
      %422 = arith.addf %376, %421 : vector<1x256xf32>
      %423 = vector.broadcast %53 : f32 to vector<1x256xf32>
      %424 = arith.mulf %423, %396 : vector<1x256xf32>
      %425 = vector.broadcast %102 : f32 to vector<1x256xf32>
      %426 = arith.mulf %425, %398 : vector<1x256xf32>
      %427 = arith.addf %424, %426 : vector<1x256xf32>
      %428 = arith.addf %382, %427 : vector<1x256xf32>
      %429 = vector.broadcast %60 : f32 to vector<1x256xf32>
      %430 = arith.mulf %429, %396 : vector<1x256xf32>
      %431 = vector.broadcast %109 : f32 to vector<1x256xf32>
      %432 = arith.mulf %431, %398 : vector<1x256xf32>
      %433 = arith.addf %430, %432 : vector<1x256xf32>
      %434 = arith.addf %388, %433 : vector<1x256xf32>
      %435 = vector.broadcast %67 : f32 to vector<1x256xf32>
      %436 = arith.mulf %435, %396 : vector<1x256xf32>
      %437 = vector.broadcast %116 : f32 to vector<1x256xf32>
      %438 = arith.mulf %437, %398 : vector<1x256xf32>
      %439 = arith.addf %436, %438 : vector<1x256xf32>
      %440 = arith.addf %394, %439 : vector<1x256xf32>
      %441 = vector.broadcast %117 : f32 to vector<1x256xf32>
      %c48_i32 = arith.constant 48 : i32
      %442 = tpu.dynamic_rotate %404 by %c48_i32 dim 1 : vector<1x256xf32>, i32 -> vector<1x256xf32>
      %443 = arith.mulf %442, %119 : vector<1x256xf32>
      %444 = arith.addf %441, %443 : vector<1x256xf32>
      %c32_i32 = arith.constant 32 : i32
      %445 = tpu.dynamic_rotate %410 by %c32_i32 dim 1 : vector<1x256xf32>, i32 -> vector<1x256xf32>
      %446 = arith.mulf %445, %121 : vector<1x256xf32>
      %447 = arith.addf %444, %446 : vector<1x256xf32>
      %c16_i32 = arith.constant 16 : i32
      %448 = tpu.dynamic_rotate %416 by %c16_i32 dim 1 : vector<1x256xf32>, i32 -> vector<1x256xf32>
      %449 = arith.mulf %448, %123 : vector<1x256xf32>
      %450 = arith.addf %447, %449 : vector<1x256xf32>
      %451 = arith.addf %450, %422 : vector<1x256xf32>
      %c240_i32 = arith.constant 240 : i32
      %452 = tpu.dynamic_rotate %428 by %c240_i32 dim 1 : vector<1x256xf32>, i32 -> vector<1x256xf32>
      %453 = arith.mulf %452, %125 : vector<1x256xf32>
      %454 = arith.addf %451, %453 : vector<1x256xf32>
      %c224_i32 = arith.constant 224 : i32
      %455 = tpu.dynamic_rotate %434 by %c224_i32 dim 1 : vector<1x256xf32>, i32 -> vector<1x256xf32>
      %456 = arith.mulf %455, %127 : vector<1x256xf32>
      %457 = arith.addf %454, %456 : vector<1x256xf32>
      %c208_i32 = arith.constant 208 : i32
      %458 = tpu.dynamic_rotate %440 by %c208_i32 dim 1 : vector<1x256xf32>, i32 -> vector<1x256xf32>
      %459 = arith.mulf %458, %129 : vector<1x256xf32>
      %460 = arith.addf %457, %459 : vector<1x256xf32>
      %461 = arith.negf %460 : vector<1x256xf32>
      %462 = math.exp %461 : vector<1x256xf32>
      %cst_51 = arith.constant 1.000000e+00 : f32
      %463 = vector.broadcast %cst_51 : f32 to vector<1x256xf32>
      %464 = arith.addf %463, %462 : vector<1x256xf32>
      %465 = arith.divf %463, %464 : vector<1x256xf32>
      %c0_52 = arith.constant 0 : index
      %c0_53 = arith.constant 0 : index
      %c0_54 = arith.constant 0 : index
      %466 = vector.load %arg6[%c0_52, %c0_53, %c0_54] : memref<1x1x256xf32, #tpu.memory_space<vmem>>, vector<1x1x256xf32>
      %467 = vector.shape_cast %466 : vector<1x1x256xf32> to vector<1x256xf32>
      %468 = vector.shape_cast %465 : vector<1x256xf32> to vector<1x1x256xf32>
      tpu.vector_store %arg6[%c0_52, %c0_53, %c0_54], %468 {strides = array<i32>} : memref<1x1x256xf32, #tpu.memory_space<vmem>>, vector<1x1x256xf32>,
    } else {
    }
    return
  }
  func.func @transform_0(%arg0: i32, %arg1: i32) -> (i32, i32, i32) {
    %c0_i32 = arith.constant 0 : i32
    %c0_i32_0 = arith.constant 0 : i32
    return %arg0, %arg1, %c0_i32 : i32, i32, i32
  }
  func.func @transform_1(%arg0: i32, %arg1: i32) -> (i32, i32) {
    %c0_i32 = arith.constant 0 : i32
    %c0_i32_0 = arith.constant 0 : i32
    %c0_i32_1 = arith.constant 0 : i32
    return %c0_i32, %c0_i32_0 : i32, i32
  }
  func.func @transform_2(%arg0: i32, %arg1: i32) -> i32 {
    %c0_i32 = arith.constant 0 : i32
    %c0_i32_0 = arith.constant 0 : i32
    return %c0_i32 : i32
  }
  func.func @transform_3(%arg0: i32, %arg1: i32) -> i32 {
    %c0_i32 = arith.constant 0 : i32
    %c0_i32_0 = arith.constant 0 : i32
    return %c0_i32 : i32
  }
  func.func @transform_4(%arg0: i32, %arg1: i32) -> (i32, i32, i32) {
    %c0_i32 = arith.constant 0 : i32
    %c0_i32_0 = arith.constant 0 : i32
    %c0_i32_1 = arith.constant 0 : i32
    return %arg0, %c0_i32, %c0_i32_0 : i32, i32, i32
  }
}

</mosaic_0001>

<llo_original>
// kernel: tpu_custom_call.1
$region0: #{tpu_custom_call.1}
  #allocation0 [shape = 'u32[]', space=smem, size = 0x4, offset = 0x4, fixed_abs, tag = 'smem constant byte address 0x4 - core index']
  #allocation1 [shape = 'u32[144,128]{1,0:T(1,128)}', space=vmem, size = 0x12000, scoped, tag = 'internal scratch']
  #allocation2 [shape = 'f32[1,256]{1,0:T(1,128)}', space=vmem, size = 0x400, scoped, tag = 'scratch operand']
  #allocation3 [shape = 'f32[1,256]{1,0:T(1,128)}', space=vmem, size = 0x400, scoped, tag = 'scratch operand']
  #allocation4 [shape = 'f32[1]{0:T(128)S(6)}', space=smem, size = 0x200, scoped, tag = 'scoped memory for tpu_custom_call.1']
  %s0 = inlined_call_operand.hbm [shape: f32[2,4,256], index: 0, kind: input, shape index: {}]
  %s1 = inlined_call_operand.hbm [shape: f32[12,256], index: 1, kind: input, shape index: {}]
  %s2 = inlined_call_operand.vmem [shape: f32[98], index: 2, kind: input, shape index: {}]
  %s3 = inlined_call_operand.<no memory space> [shape: f32[1], index: 3, kind: input, shape index: {}]
  %s4 = inlined_call_operand.hbm [shape: f32[2,1,256], index: 4, kind: output, shape index: {}]
  %s5 = sld [smem:[#allocation0]]
  $region69: #{tpu_custom_call.1} parent=0
    _
  %s7 = ssub.s32 1, %s5
  %s8 = scalar_select 0, %s7, %s5
  %9 = sst [smem:[#allocation4]] %s3
  $region1: #{tpu_custom_call.1} parent=0
    #allocation5 [shape = 'u8[8192]{0}', space=vmem, size = 0x2000, scoped, tag = 'input window, operand 0']
    #allocation6 [shape = 's32[2]{0}', space=sflag, size = 0x8, scoped, tag = 'scoped memory for tpu_custom_call.1']
    #allocation7 [shape = 's32[2]{0}', space=sflag, size = 0x8, scoped, tag = 'scoped memory for tpu_custom_call.1']
    #allocation8 [shape = 's32[2]{0}', space=sflag, size = 0x8, scoped, tag = 'scoped memory for tpu_custom_call.1']
    #allocation9 [shape = 'u8[16384]{0}', space=vmem, size = 0x4000, scoped, tag = 'input window, operand 1, single buffered']
    #allocation10 [shape = 's32[1]{0}', space=sflag, size = 0x4, scoped, tag = 'scoped memory for tpu_custom_call.1']
    #allocation11 [shape = 'u8[512]{0}', space=smem, size = 0x200, scoped, tag = 'input window, operand 2, single buffered']
    #allocation12 [shape = 'u8[2048]{0}', space=vmem, size = 0x800, scoped, tag = 'output window, operand 0']
    %10 = vsyncpa [#allocation6], 0
    %s11 = scalar_lea.sflag [#allocation6], 1
    %12 = vsyncpa %s11, 0
    %13 = vsyncpa [#allocation10], 0
    %14 = vsyncpa [#allocation8], 0
    %15 = vsyncpa [#allocation7], 0
    %s16 = scalar_lea.sflag [#allocation7], 1
    %17 = vsyncpa %s16, 0
    loop: start=0, step=1, limit=4
    $region2: #{tpu_custom_call.1} parent=1 // loop_pre_header
      _
    $region3: #{tpu_custom_call.1} parent=1 // loop_header
      %s19 = sphi 0, %s23
      %p20 = scmp.ge.s32.totalorder %s19, 4
      %s26 = sphi 0, %s38
      %s27 = sphi 0, %s34
      %s28 = sphi 0, %s26
      %s29 = sphi 0, %s27
      %s30 = sphi 0, %s28
      %s31 = sphi 0, %s29
      %s43 = sphi 0, %s45
      %s46 = sphi 0, %s43
      %s47 = sphi 0, %s46
      %s63 = sphi 0, %s47
      %s67 = sphi 0, %s67
      %s69 = sphi 0, %s67
      %s70 = sphi 0, %s69
      %s84 = sphi 0, %s70
      %s88 = sphi 0, %s88
      %s90 = sphi 0, %s88
      %s91 = sphi 0, %s90
      %s105 = sphi 0, %s91
      %s109 = sphi 0, %s109
      %s111 = sphi 0, %s109
      %s112 = sphi 0, %s111
      %s126 = sphi 0, %s112
      %s132 = sphi 0, %s134
      %s135 = sphi 0, %s132
      %s136 = sphi 0, %s135
      %s152 = sphi 0, %s136
    $region4: #{tpu_custom_call.1} parent=1 // loop_header_branch
      %22 = sbr.rel (%p20) target = $region8
    $region5: #{tpu_custom_call.1} parent=1 // loop_body
      %s24 = ssub.s32 %s19, 1
      %s25 = ssub.s32 %s19, 2
      %s32 = sadd.s32 1, %s27
      %p33 = scmp.ge.s32.totalorder %s32, 1
      %s34 = scalar_select %p33, 0, %s32
      %s35 = sadd.s32 1, %s26
      %s36 = scalar_select %p33, %s35, %s26
      %p37 = scmp.ge.s32.totalorder %s36, 2
      %s38 = scalar_select %p37, 0, %s36
      %s39 = ssub.s32 %s26, %s38
      %s40 = ssub.s32 %s27, %s34
      %s41 = sor.u32 %s39, %s40
      %p42 = scmp.eq.s32.totalorder %s41, 0
      %s44 = sadd.s32 %s43, 1
      %s45 = scalar_select %p42, %s43, %s44
      %p48 = pneg %p42
      %p49 = scmp.eq.s32.totalorder %s19, 1
      %p50 = por %p48, %p49
      %p51 = scmp.ne.s32.totalorder %s43, %s46
      %p52 = scmp.eq.s32.totalorder %s19, 0
      %p53 = por %p51, %p52
      %p54 = scmp.ne.s32.totalorder %s43, %s46
      %p55 = scmp.eq.s32.totalorder %s24, 1
      %p56 = por %p54, %p55
      %p57 = scmp.ne.s32.totalorder %s46, %s47
      %p58 = scmp.eq.s32.totalorder %s24, 0
      %p59 = por %p57, %p58
      %p60 = scmp.ne.s32.totalorder %s46, %s47
      %p61 = scmp.eq.s32.totalorder %s25, 1
      %p62 = por %p60, %p61
      %p64 = scmp.ne.s32.totalorder %s47, %s63
      %p65 = scmp.eq.s32.totalorder %s25, 0
      %p66 = por %p64, %p65
      %s68 = sadd.s32 %s67, 1
      %p71 = scmp.eq.s32.totalorder %s19, 1
      %p72 = scmp.ne.s32.totalorder %s67, %s69
      %p73 = scmp.eq.s32.totalorder %s19, 0
      %p74 = por %p72, %p73
      %p75 = scmp.ne.s32.totalorder %s67, %s69
      %p76 = scmp.eq.s32.totalorder %s24, 1
      %p77 = por %p75, %p76
      %p78 = scmp.ne.s32.totalorder %s69, %s70
      %p79 = scmp.eq.s32.totalorder %s24, 0
      %p80 = por %p78, %p79
      %p81 = scmp.ne.s32.totalorder %s69, %s70
      %p82 = scmp.eq.s32.totalorder %s25, 1
      %p83 = por %p81, %p82
      %p85 = scmp.ne.s32.totalorder %s70, %s84
      %p86 = scmp.eq.s32.totalorder %s25, 0
      %p87 = por %p85, %p86
      %s89 = sadd.s32 %s88, 1
      %p92 = scmp.eq.s32.totalorder %s19, 1
      %p93 = scmp.ne.s32.totalorder %s88, %s90
      %p94 = scmp.eq.s32.totalorder %s19, 0
      %p95 = por %p93, %p94
      %p96 = scmp.ne.s32.totalorder %s88, %s90
      %p97 = scmp.eq.s32.totalorder %s24, 1
      %p98 = por %p96, %p97
      %p99 = scmp.ne.s32.totalorder %s90, %s91
      %p100 = scmp.eq.s32.totalorder %s24, 0
      %p101 = por %p99, %p100
      %p102 = scmp.ne.s32.totalorder %s90, %s91
      %p103 = scmp.eq.s32.totalorder %s25, 1
      %p104 = por %p102, %p103
      %p106 = scmp.ne.s32.totalorder %s91, %s105
      %p107 = scmp.eq.s32.totalorder %s25, 0
      %p108 = por %p106, %p107
      %s110 = sadd.s32 %s109, 1
      %p113 = scmp.eq.s32.totalorder %s19, 1
      %p114 = scmp.ne.s32.totalorder %s109, %s111
      %p115 = scmp.eq.s32.totalorder %s19, 0
      %p116 = por %p114, %p115
      %p117 = scmp.ne.s32.totalorder %s109, %s111
      %p118 = scmp.eq.s32.totalorder %s24, 1
      %p119 = por %p117, %p118
      %p120 = scmp.ne.s32.totalorder %s111, %s112
      %p121 = scmp.eq.s32.totalorder %s24, 0
      %p122 = por %p120, %p121
      %p123 = scmp.ne.s32.totalorder %s111, %s112
      %p124 = scmp.eq.s32.totalorder %s25, 1
      %p125 = por %p123, %p124
      %p127 = scmp.ne.s32.totalorder %s112, %s126
      %p128 = scmp.eq.s32.totalorder %s25, 0
      %p129 = por %p127, %p128
      %s130 = ssub.s32 %s26, %s38
      %p131 = scmp.eq.s32.totalorder %s130, 0
      %s133 = sadd.s32 %s132, 1
      %s134 = scalar_select %p131, %s132, %s133
      %p137 = pneg %p131
      %p138 = scmp.eq.s32.totalorder %s19, 1
      %p139 = por %p137, %p138
      %p140 = scmp.ne.s32.totalorder %s132, %s135
      %p141 = scmp.eq.s32.totalorder %s19, 0
      %p142 = por %p140, %p141
      %p143 = scmp.ne.s32.totalorder %s132, %s135
      %p144 = scmp.eq.s32.totalorder %s24, 1
      %p145 = por %p143, %p144
      %p146 = scmp.ne.s32.totalorder %s135, %s136
      %p147 = scmp.eq.s32.totalorder %s24, 0
      %p148 = por %p146, %p147
      %p149 = scmp.ne.s32.totalorder %s135, %s136
      %p150 = scmp.eq.s32.totalorder %s25, 1
      %p151 = por %p149, %p150
      %p153 = scmp.ne.s32.totalorder %s136, %s152
      %p154 = scmp.eq.s32.totalorder %s25, 0
      %p155 = por %p153, %p154
      %p156 = scmp.le.s32.totalorder 1, %s19
      %p157 = scmp.lt.s32.totalorder %s19, 3
      %p158 = pnand %p156, %p157
      %p159 = pneg %p158
      // Predicated region
      $region9: #{tpu_custom_call.1} parent=5 // pred_check
        _
      $region10: #{tpu_custom_call.1} parent=5 // pred_check_branch
        %161 = sbr.rel (%p158) target = $region12
      $region11: #{tpu_custom_call.1} parent=5 // pred_region
        %s162 = ssub.s32 %s19, 1
        // Predicated region
        $region13: #{tpu_custom_call.1} parent=11 // pred_check
          %p163 = pneg %p80
        $region14: #{tpu_custom_call.1} parent=11 // pred_check_branch
          %165 = sbr.rel (%p163) target = $region16
        $region15: #{tpu_custom_call.1} parent=11 // pred_region
          %s167 = ssub.s32 512, 512
          %168 = vsyncadd [#allocation10], %s167
          %s169 = sshll.u32 [#allocation9], 4
          %s170 = int_to_ptr.vmem [resolvable:$true] %s169
          %175 = dma.hbm_to_vmem [thread:$0]  %s1, 512, %s170, [#allocation10], 256, 256, 16
        $region16: #{tpu_custom_call.1} parent=11 // pred_fallthru
          _
        // Predicated region
        $region17: #{tpu_custom_call.1} parent=11 // pred_check
          %p176 = pneg %p101
        $region18: #{tpu_custom_call.1} parent=11 // pred_check_branch
          %178 = sbr.rel (%p176) target = $region20
        $region19: #{tpu_custom_call.1} parent=11 // pred_region
          %s180 = ssub.s32 16, 16
          %181 = vsyncadd [#allocation8], %s180
          %s183 = sshll.u32 %s2, 4
          %s184 = int_to_ptr.vmem [resolvable:$true] %s183
          %186 = dma.vmem_to_smem %s184, 16, [#allocation11], [#allocation8]
        $region20: #{tpu_custom_call.1} parent=11 // pred_fallthru
          _
        // Predicated region
        $region21: #{tpu_custom_call.1} parent=11 // pred_check
          %p187 = pneg %p122
        $region22: #{tpu_custom_call.1} parent=11 // pred_check_branch
          %189 = sbr.rel (%p187) target = $region24
        $region23: #{tpu_custom_call.1} parent=11 // pred_region
          _
        $region24: #{tpu_custom_call.1} parent=11 // pred_fallthru
          _
      $region12: #{tpu_custom_call.1} parent=5 // pred_fallthru
        _
      %p190 = scmp.lt.s32.totalorder %s19, 2
      // Predicated region
      $region25: #{tpu_custom_call.1} parent=5 // pred_check
        %p191 = pneg %p190
      $region26: #{tpu_custom_call.1} parent=5 // pred_check_branch
        %193 = sbr.rel (%p191) target = $region28
      $region27: #{tpu_custom_call.1} parent=5 // pred_region
        // Predicated region
        $region29: #{tpu_custom_call.1} parent=27 // pred_check
          %p194 = pneg %p53
        $region30: #{tpu_custom_call.1} parent=27 // pred_check_branch
          %196 = sbr.rel (%p194) target = $region32
        $region31: #{tpu_custom_call.1} parent=27 // pred_region
          %s197 = sand.u32 %s43, 1
          %s198 = scalar_lea.sflag [#allocation6], %s197
          %s199 = sand.u32 %s43, 1
          %s200 = smul.addr %s199, 8
          %s201 = scalar_lea.vmem [#allocation5], %s200
          %s203 = ssub.s32 128, 128
          %204 = vsyncadd %s198, %s203
          %s205 = smul.addr %s27, 2
          %s206 = smul.addr %s26, 2
          %s207 = sadd.s32 %s205, %s206
          %s208 = smul.addr %s207, 64
          %s209 = scalar_lea.hbm %s0, %s208
          %s211 = sshll.u32 %s201, 4
          %s212 = int_to_ptr.vmem [resolvable:$true] %s211
          %214 = dma.hbm_to_vmem [thread:$0]  %s209, 128, %s212, %s198
        $region32: #{tpu_custom_call.1} parent=27 // pred_fallthru
          _
      $region28: #{tpu_custom_call.1} parent=5 // pred_fallthru
        _
      %p215 = scmp.le.s32.totalorder 1, %s19
      %p216 = scmp.lt.s32.totalorder %s19, 3
      %p217 = pnand %p215, %p216
      %p218 = pneg %p217
      // Predicated region
      $region33: #{tpu_custom_call.1} parent=5 // pred_check
        _
      $region34: #{tpu_custom_call.1} parent=5 // pred_check_branch
        %220 = sbr.rel (%p217) target = $region36
      $region35: #{tpu_custom_call.1} parent=5 // pred_region
        %s221 = ssub.s32 %s19, 1
        %s222 = sand.u32 %s46, 1
        %s223 = scalar_lea.sflag [#allocation6], %s222
        %s224 = sand.u32 %s46, 1
        %s225 = smul.addr %s224, 8
        %s226 = scalar_lea.vmem [#allocation5], %s225
        // Predicated region
        $region37: #{tpu_custom_call.1} parent=35 // pred_check
          %p227 = pneg %p59
        $region38: #{tpu_custom_call.1} parent=35 // pred_check_branch
          %229 = sbr.rel (%p227) target = $region40
        $region39: #{tpu_custom_call.1} parent=35 // pred_region
          %230 = dma.done %s223, 128
        $region40: #{tpu_custom_call.1} parent=35 // pred_fallthru
          _
        // Predicated region
        $region41: #{tpu_custom_call.1} parent=35 // pred_check
          %p231 = pneg %p80
        $region42: #{tpu_custom_call.1} parent=35 // pred_check_branch
          %233 = sbr.rel (%p231) target = $region44
        $region43: #{tpu_custom_call.1} parent=35 // pred_region
          %234 = dma.done [#allocation10], 512
        $region44: #{tpu_custom_call.1} parent=35 // pred_fallthru
          _
        // Predicated region
        $region45: #{tpu_custom_call.1} parent=35 // pred_check
          %p235 = pneg %p101
        $region46: #{tpu_custom_call.1} parent=35 // pred_check_branch
          %237 = sbr.rel (%p235) target = $region48
        $region47: #{tpu_custom_call.1} parent=35 // pred_region
          %238 = dma.done [#allocation8], 16
        $region48: #{tpu_custom_call.1} parent=35 // pred_fallthru
          _
        %239 = sfence
        %s240 = sand.u32 %s46, 1
        %s241 = scalar_lea.sflag [#allocation6], %s240
        %s242 = sand.u32 %s46, 1
        %s243 = smul.addr %s242, 8
        %s244 = scalar_lea.vmem [#allocation5], %s243
        %p245 = pneg %p59
        %p246 = pneg %p56
        %p247 = pneg %p80
        %p248 = pneg %p77
        %p249 = pneg %p101
        %p250 = pneg %p98
        %p251 = pneg %p122
        %p252 = pneg %p119
        %p253 = pneg %p148
        %p254 = pneg %p145
        %s255 = sand.u32 %s135, 1
        %s256 = scalar_lea.sflag [#allocation7], %s255
        %s257 = sand.u32 %s135, 1
        %s258 = smul.addr %s257, 2
        %s259 = scalar_lea.vmem [#allocation12], %s258
        %p260 = scmp.eq.s32.totalorder %s29, 0
        // Predicated region
        $region49: #{tpu_custom_call.1} parent=35 // pred_check
          %p261 = pneg %p260
        $region50: #{tpu_custom_call.1} parent=35 // pred_check_branch
          %263 = sbr.rel (%p261) target = $region52
        $region51: #{tpu_custom_call.1} parent=35 // pred_region
          %v264 = vlaneseq
          %vm265 = vcmp.ge.s32.totalorder %v264, 0
          %vm266 = vcmp.lt.s32.totalorder %v264, 256
          %vm267 = vmand %vm265, %vm266
          %268 = vst.msk [vmem:[#allocation2] sm:$0x3] %vm267, 0.0
          %269 = vst.msk [vmem:[#allocation3] sm:$0x3] %vm267, -inf
        $region52: #{tpu_custom_call.1} parent=35 // pred_fallthru
          _
        %v270 = vld [vmem:[%s226] sm:$0xff]
        %v271 = vld [vmem:[#allocation2] sm:$0x3]
        %v273 = vcombine.high %v270, %v270
        %vm275 = vcmask 1043456
        %v276 = vsel %vm275, %v270, 0.0
        %v277 = vrot.slane %v276, 4
        %v278 = vadd.f32 %v276, %v277
        %v279 = vrot.slane %v278, 2
        %v280 = vadd.f32 %v278, %v279
        %v281 = vrot.slane %v280, 1
        %v282 = vadd.f32 %v280, %v281
        %v283 = vsel %vm275, %v273, 0.0
        %v284 = vrot.slane %v283, 4
        %v285 = vadd.f32 %v283, %v284
        %v286 = vrot.slane %v285, 2
        %v287 = vadd.f32 %v285, %v286
        %v288 = vrot.slane %v287, 1
        %v289 = vadd.f32 %v287, %v288
        %v292 = vcombine.low %v282, %v289
        %v294 = vunpack.c.l.s4 1966171168
        %v295 = vunpack.c.0.s8 %v294
        %v296 = vlaneseq
        %v297 = vshrl.u32 %v296, 7
        %v298 = vsub.s32 %v295, %v297
        %v299 = vrot.slane %v292, %v298
        %v301 = vunpack.c.l.s4 1966171168
        %v302 = vunpack.c.0.s8 %v301
        %v303 = vlaneseq
        %v304 = vshrl.u32 %v303, 7
        %v305 = vsub.s32 %v302, %v304
        %v306 = vrot.slane %v299, %v305
        %v308 = vadd.f32 %v271, %v306
        %v309 = vlaneseq
        %vm310 = vcmp.ge.s32.totalorder %v309, 0
        %vm311 = vcmp.lt.s32.totalorder %v309, 256
        %vm312 = vmand %vm310, %vm311
        %313 = vst.msk [vmem:[#allocation2] sm:$0x3] %vm312, %v308
        %v314 = vld [vmem:[#allocation3] sm:$0x3]
        %v315 = vsel %vm275, %v270, -inf
        %v316 = vrot.slane %v315, 4
        %v317 = vmax.f32 %v315, %v316
        %v318 = vrot.slane %v317, 2
        %v319 = vmax.f32 %v317, %v318
        %v320 = vrot.slane %v319, 1
        %v321 = vmax.f32 %v319, %v320
        %v322 = vsel %vm275, %v273, -inf
        %v323 = vrot.slane %v322, 4
        %v324 = vmax.f32 %v322, %v323
        %v325 = vrot.slane %v324, 2
        %v326 = vmax.f32 %v324, %v325
        %v327 = vrot.slane %v326, 1
        %v328 = vmax.f32 %v326, %v327
        %v331 = vcombine.low %v321, %v328
        %v333 = vunpack.c.l.s4 1966171168
        %v334 = vunpack.c.0.s8 %v333
        %v335 = vlaneseq
        %v336 = vshrl.u32 %v335, 7
        %v337 = vsub.s32 %v334, %v336
        %v338 = vrot.slane %v331, %v337
        %v340 = vunpack.c.l.s4 1966171168
        %v341 = vunpack.c.0.s8 %v340
        %v342 = vlaneseq
        %v343 = vshrl.u32 %v342, 7
        %v344 = vsub.s32 %v341, %v343
        %v345 = vrot.slane %v338, %v344
        %v347 = vmax.f32 %v314, %v345
        %348 = vst.msk [vmem:[#allocation3] sm:$0x3] %vm312, %v347
        // Predicated region
        $region53: #{tpu_custom_call.1} parent=35 // pred_check
          %p349 = pneg %p260
        $region54: #{tpu_custom_call.1} parent=35 // pred_check_branch
          %351 = sbr.rel (%p349) target = $region56
        $region55: #{tpu_custom_call.1} parent=35 // pred_region
          %v352 = vld [vmem:[#allocation2] sm:$0x3]
          %v353 = vmul.f32 %v352, 0.25
          %v354 = vld [vmem:[#allocation3] sm:$0x3]
          %s355 = sld [smem:[#allocation11]]
          %s356 = sld [smem:[#allocation11 + $0x1]]
          %s357 = sld [smem:[#allocation11 + $0x2]]
          %s358 = sld [smem:[#allocation11 + $0x3]]
          %s359 = sld [smem:[#allocation11 + $0x4]]
          %s360 = sld [smem:[#allocation11 + $0x5]]
          %s361 = sld [smem:[#allocation11 + $0x6]]
          %s362 = sld [smem:[#allocation11 + $0x7]]
          %s363 = sld [smem:[#allocation11 + $0x8]]
          %s364 = sld [smem:[#allocation11 + $0x9]]
          %s365 = sld [smem:[#allocation11 + $0xa]]
          %s366 = sld [smem:[#allocation11 + $0xb]]
          %s367 = sld [smem:[#allocation11 + $0xc]]
          %s368 = sld [smem:[#allocation11 + $0xd]]
          %s369 = sld [smem:[#allocation11 + $0xe]]
          %s370 = sld [smem:[#allocation11 + $0xf]]
          %s371 = sld [smem:[#allocation11 + $0x10]]
          %s372 = sld [smem:[#allocation11 + $0x11]]
          %s373 = sld [smem:[#allocation11 + $0x12]]
          %s374 = sld [smem:[#allocation11 + $0x13]]
          %s375 = sld [smem:[#allocation11 + $0x14]]
          %s376 = sld [smem:[#allocation11 + $0x15]]
          %s377 = sld [smem:[#allocation11 + $0x16]]
          %s378 = sld [smem:[#allocation11 + $0x17]]
          %s379 = sld [smem:[#allocation11 + $0x18]]
          %s380 = sld [smem:[#allocation11 + $0x19]]
          %s381 = sld [smem:[#allocation11 + $0x1a]]
          %s382 = sld [smem:[#allocation11 + $0x1b]]
          %s383 = sld [smem:[#allocation11 + $0x1c]]
          %s384 = sld [smem:[#allocation11 + $0x1d]]
          %s385 = sld [smem:[#allocation11 + $0x1e]]
          %s386 = sld [smem:[#allocation11 + $0x1f]]
          %s387 = sld [smem:[#allocation11 + $0x20]]
          %s388 = sld [smem:[#allocation11 + $0x21]]
          %s389 = sld [smem:[#allocation11 + $0x22]]
          %s390 = sld [smem:[#allocation11 + $0x23]]
          %s391 = sld [smem:[#allocation11 + $0x24]]
          %s392 = sld [smem:[#allocation11 + $0x25]]
          %s393 = sld [smem:[#allocation11 + $0x26]]
          %s394 = sld [smem:[#allocation11 + $0x27]]
          %s395 = sld [smem:[#allocation11 + $0x28]]
          %s396 = sld [smem:[#allocation11 + $0x29]]
          %s397 = sld [smem:[#allocation11 + $0x2a]]
          %s398 = sld [smem:[#allocation11 + $0x2b]]
          %s399 = sld [smem:[#allocation11 + $0x2c]]
          %s400 = sld [smem:[#allocation11 + $0x2d]]
          %s401 = sld [smem:[#allocation11 + $0x2e]]
          %s402 = sld [smem:[#allocation11 + $0x2f]]
          %s403 = sld [smem:[#allocation11 + $0x30]]
          %s404 = sld [smem:[#allocation11 + $0x31]]
          %s405 = sld [smem:[#allocation11 + $0x32]]
          %s406 = sld [smem:[#allocation11 + $0x33]]
          %s407 = sld [smem:[#allocation11 + $0x34]]
          %s408 = sld [smem:[#allocation11 + $0x35]]
          %s409 = sld [smem:[#allocation11 + $0x36]]
          %s410 = sld [smem:[#allocation11 + $0x37]]
          %s411 = sld [smem:[#allocation11 + $0x38]]
          %s412 = sld [smem:[#allocation11 + $0x39]]
          %s413 = sld [smem:[#allocation11 + $0x3a]]
          %s414 = sld [smem:[#allocation11 + $0x3b]]
          %s415 = sld [smem:[#allocation11 + $0x3c]]
          %s416 = sld [smem:[#allocation11 + $0x3d]]
          %s417 = sld [smem:[#allocation11 + $0x3e]]
          %s418 = sld [smem:[#allocation11 + $0x3f]]
          %s419 = sld [smem:[#allocation11 + $0x40]]
          %s420 = sld [smem:[#allocation11 + $0x41]]
          %s421 = sld [smem:[#allocation11 + $0x42]]
          %s422 = sld [smem:[#allocation11 + $0x43]]
          %s423 = sld [smem:[#allocation11 + $0x44]]
          %s424 = sld [smem:[#allocation11 + $0x45]]
          %s425 = sld [smem:[#allocation11 + $0x46]]
          %s426 = sld [smem:[#allocation11 + $0x47]]
          %s427 = sld [smem:[#allocation11 + $0x48]]
          %s428 = sld [smem:[#allocation11 + $0x49]]
          %s429 = sld [smem:[#allocation11 + $0x4a]]
          %s430 = sld [smem:[#allocation11 + $0x4b]]
          %s431 = sld [smem:[#allocation11 + $0x4c]]
          %s432 = sld [smem:[#allocation11 + $0x4d]]
          %s433 = sld [smem:[#allocation11 + $0x4e]]
          %s434 = sld [smem:[#allocation11 + $0x4f]]
          %s435 = sld [smem:[#allocation11 + $0x50]]
          %s436 = sld [smem:[#allocation11 + $0x51]]
          %s437 = sld [smem:[#allocation11 + $0x52]]
          %s438 = sld [smem:[#allocation11 + $0x53]]
          %s439 = sld [smem:[#allocation11 + $0x54]]
          %s440 = sld [smem:[#allocation11 + $0x55]]
          %s441 = sld [smem:[#allocation11 + $0x56]]
          %s442 = sld [smem:[#allocation11 + $0x57]]
          %s443 = sld [smem:[#allocation11 + $0x58]]
          %s444 = sld [smem:[#allocation11 + $0x59]]
          %s445 = sld [smem:[#allocation11 + $0x5a]]
          %s446 = sld [smem:[#allocation11 + $0x5b]]
          %s447 = sld [smem:[#allocation11 + $0x5c]]
          %s448 = sld [smem:[#allocation11 + $0x5d]]
          %s449 = sld [smem:[#allocation11 + $0x5e]]
          %s450 = sld [smem:[#allocation11 + $0x5f]]
          %s451 = sld [smem:[#allocation11 + $0x60]]
          %s452 = sld [smem:[#allocation11 + $0x61]]
          %s453 = sld [smem:[#allocation4]]
          %v454 = vld [vmem:[#allocation9] ss:$8 sm:$0x3]
          %s455 = scalar_lea.vmem [#allocation9], 6
          %v456 = vld [vmem:[%s455] ss:$8 sm:$0x3]
          %s457 = scalar_lea.vmem [#allocation9], 1
          %v458 = vld [vmem:[%s457] ss:$8 sm:$0x3]
          %s459 = scalar_lea.vmem [#allocation9], 7
          %v460 = vld [vmem:[%s459] ss:$8 sm:$0x3]
          %s461 = scalar_lea.vmem [#allocation9], 2
          %v462 = vld [vmem:[%s461] ss:$8 sm:$0x3]
          %s463 = scalar_lea.vmem [#allocation9], 16
          %v464 = vld [vmem:[%s463] ss:$8 sm:$0x3]
          %s465 = scalar_lea.vmem [#allocation9], 3
          %v466 = vld [vmem:[%s465] ss:$8 sm:$0x3]
          %s467 = scalar_lea.vmem [#allocation9], 17
          %v468 = vld [vmem:[%s467] ss:$8 sm:$0x3]
          %s469 = scalar_lea.vmem [#allocation9], 4
          %v470 = vld [vmem:[%s469] ss:$8 sm:$0x3]
          %s471 = scalar_lea.vmem [#allocation9], 18
          %v472 = vld [vmem:[%s471] ss:$8 sm:$0x3]
          %s473 = scalar_lea.vmem [#allocation9], 5
          %v474 = vld [vmem:[%s473] ss:$8 sm:$0x3]
          %s475 = scalar_lea.vmem [#allocation9], 19
          %v476 = vld [vmem:[%s475] ss:$8 sm:$0x3]
          %v478 = vlaneseq
          %v479 = vshrl.u32 %v478, 7
          %v480 = vsub.s32 0, %v479
          %v481 = vrot.slane %v353, %v480
          %v482 = vlaneseq
          %v483 = vshrl.u32 %v482, 7
          %v484 = vsub.s32 1, %v483
          %v485 = vrot.slane %v353, %v484
          %488 = vrot.lane.b32.xlu0 %v481, 3
          %v489 = vpop.permute.xlu0 %488
          %490 = vrot.lane.b32.xlu0 %v485, 3
          %v491 = vpop.permute.xlu0 %490
          %v492 = vlaneseq
          %v493 = vand.u32 %v492, 127
          %vm494 = vcmp.lt.s32.totalorder %v493, 3
          %v495 = vsel %vm494, %v489, %v491
          %v496 = vsel %vm494, %v491, %v489
          %v498 = vlaneseq
          %v499 = vshrl.u32 %v498, 7
          %v500 = vsub.s32 0, %v499
          %v501 = vrot.slane %v454, %v500
          %v502 = vlaneseq
          %v503 = vshrl.u32 %v502, 7
          %v504 = vsub.s32 1, %v503
          %v505 = vrot.slane %v454, %v504
          %v508 = vmul.f32 %v496, %v501
          %v509 = vmul.f32 %v495, %v505
          %v511 = vlaneseq
          %v512 = vshrl.u32 %v511, 7
          %v513 = vsub.s32 0, %v512
          %v514 = vrot.slane %v354, %v513
          %v515 = vlaneseq
          %v516 = vshrl.u32 %v515, 7
          %v517 = vsub.s32 1, %v516
          %v518 = vrot.slane %v354, %v517
          %521 = vrot.lane.b32.xlu0 %v514, 3
          %v522 = vpop.permute.xlu0 %521
          %523 = vrot.lane.b32.xlu0 %v518, 3
          %v524 = vpop.permute.xlu0 %523
          %v525 = vsel %vm494, %v522, %v524
          %v526 = vsel %vm494, %v524, %v522
          %v527 = vmul.f32 %v526, %v501
          %v528 = vmul.f32 %v525, %v505
          %v529 = vstv %s355
          %v530 = vmul.f32 %v529, %v508
          %v531 = vmul.f32 %v529, %v509
          %v532 = vstv %s404
          %v533 = vmul.f32 %v532, %v527
          %v534 = vmul.f32 %v532, %v528
          %v535 = vadd.f32 %v530, %v533
          %v536 = vadd.f32 %v531, %v534
          %v537 = vstv %s362
          %v538 = vmul.f32 %v537, %v508
          %v539 = vmul.f32 %v537, %v509
          %v540 = vstv %s411
          %v541 = vmul.f32 %v540, %v527
          %v542 = vmul.f32 %v540, %v528
          %v543 = vadd.f32 %v538, %v541
          %v544 = vadd.f32 %v539, %v542
          %v545 = vstv %s369
          %v546 = vmul.f32 %v545, %v508
          %v547 = vmul.f32 %v545, %v509
          %v548 = vstv %s418
          %v549 = vmul.f32 %v548, %v527
          %v550 = vmul.f32 %v548, %v528
          %v551 = vadd.f32 %v546, %v549
          %v552 = vadd.f32 %v547, %v550
          %v553 = vstv %s376
          %v554 = vmul.f32 %v553, %v508
          %v555 = vmul.f32 %v553, %v509
          %v556 = vstv %s425
          %v557 = vmul.f32 %v556, %v527
          %v558 = vmul.f32 %v556, %v528
          %v559 = vadd.f32 %v554, %v557
          %v560 = vadd.f32 %v555, %v558
          %v561 = vstv %s383
          %v562 = vmul.f32 %v561, %v508
          %v563 = vmul.f32 %v561, %v509
          %v564 = vstv %s432
          %v565 = vmul.f32 %v564, %v527
          %v566 = vmul.f32 %v564, %v528
          %v567 = vadd.f32 %v562, %v565
          %v568 = vadd.f32 %v563, %v566
          %v569 = vstv %s390
          %v570 = vmul.f32 %v569, %v508
          %v571 = vmul.f32 %v569, %v509
          %v572 = vstv %s439
          %v573 = vmul.f32 %v572, %v527
          %v574 = vmul.f32 %v572, %v528
          %v575 = vadd.f32 %v570, %v573
          %v576 = vadd.f32 %v571, %v574
          %v577 = vstv %s397
          %v578 = vmul.f32 %v577, %v508
          %v579 = vmul.f32 %v577, %v509
          %v580 = vstv %s446
          %v581 = vmul.f32 %v580, %v527
          %v582 = vmul.f32 %v580, %v528
          %v583 = vadd.f32 %v578, %v581
          %v584 = vadd.f32 %v579, %v582
          %585 = vrot.lane.b32.xlu0 %v481, 2
          %v586 = vpop.permute.xlu0 %585
          %587 = vrot.lane.b32.xlu0 %v485, 2
          %v588 = vpop.permute.xlu0 %587
          %vm589 = vcmp.lt.s32.totalorder %v493, 2
          %v590 = vsel %vm589, %v586, %v588
          %v591 = vsel %vm589, %v588, %v586
          %v593 = vlaneseq
          %v594 = vshrl.u32 %v593, 7
          %v595 = vsub.s32 0, %v594
          %v596 = vrot.slane %v458, %v595
          %v597 = vlaneseq
          %v598 = vshrl.u32 %v597, 7
          %v599 = vsub.s32 1, %v598
          %v600 = vrot.slane %v458, %v599
          %v603 = vmul.f32 %v591, %v596
          %v604 = vmul.f32 %v590, %v600
          %605 = vrot.lane.b32.xlu0 %v514, 2
          %v606 = vpop.permute.xlu0 %605
          %607 = vrot.lane.b32.xlu0 %v518, 2
          %v608 = vpop.permute.xlu0 %607
          %v609 = vsel %vm589, %v606, %v608
          %v610 = vsel %vm589, %v608, %v606
          %v611 = vmul.f32 %v610, %v596
          %v612 = vmul.f32 %v609, %v600
          %v613 = vstv %s356
          %v614 = vmul.f32 %v613, %v603
          %v615 = vmul.f32 %v613, %v604
          %v616 = vstv %s405
          %v617 = vmul.f32 %v616, %v611
          %v618 = vmul.f32 %v616, %v612
          %v619 = vadd.f32 %v614, %v617
          %v620 = vadd.f32 %v615, %v618
          %v621 = vadd.f32 %v535, %v619
          %v622 = vadd.f32 %v536, %v620
          %v623 = vstv %s363
          %v624 = vmul.f32 %v623, %v603
          %v625 = vmul.f32 %v623, %v604
          %v626 = vstv %s412
          %v627 = vmul.f32 %v626, %v611
          %v628 = vmul.f32 %v626, %v612
          %v629 = vadd.f32 %v624, %v627
          %v630 = vadd.f32 %v625, %v628
          %v631 = vadd.f32 %v543, %v629
          %v632 = vadd.f32 %v544, %v630
          %v633 = vstv %s370
          %v634 = vmul.f32 %v633, %v603
          %v635 = vmul.f32 %v633, %v604
          %v636 = vstv %s419
          %v637 = vmul.f32 %v636, %v611
          %v638 = vmul.f32 %v636, %v612
          %v639 = vadd.f32 %v634, %v637
          %v640 = vadd.f32 %v635, %v638
          %v641 = vadd.f32 %v551, %v639
          %v642 = vadd.f32 %v552, %v640
          %v643 = vstv %s377
          %v644 = vmul.f32 %v643, %v603
          %v645 = vmul.f32 %v643, %v604
          %v646 = vstv %s426
          %v647 = vmul.f32 %v646, %v611
          %v648 = vmul.f32 %v646, %v612
          %v649 = vadd.f32 %v644, %v647
          %v650 = vadd.f32 %v645, %v648
          %v651 = vadd.f32 %v559, %v649
          %v652 = vadd.f32 %v560, %v650
          %v653 = vstv %s384
          %v654 = vmul.f32 %v653, %v603
          %v655 = vmul.f32 %v653, %v604
          %v656 = vstv %s433
          %v657 = vmul.f32 %v656, %v611
          %v658 = vmul.f32 %v656, %v612
          %v659 = vadd.f32 %v654, %v657
          %v660 = vadd.f32 %v655, %v658
          %v661 = vadd.f32 %v567, %v659
          %v662 = vadd.f32 %v568, %v660
          %v663 = vstv %s391
          %v664 = vmul.f32 %v663, %v603
          %v665 = vmul.f32 %v663, %v604
          %v666 = vstv %s440
          %v667 = vmul.f32 %v666, %v611
          %v668 = vmul.f32 %v666, %v612
          %v669 = vadd.f32 %v664, %v667
          %v670 = vadd.f32 %v665, %v668
          %v671 = vadd.f32 %v575, %v669
          %v672 = vadd.f32 %v576, %v670
          %v673 = vstv %s398
          %v674 = vmul.f32 %v673, %v603
          %v675 = vmul.f32 %v673, %v604
          %v676 = vstv %s447
          %v677 = vmul.f32 %v676, %v611
          %v678 = vmul.f32 %v676, %v612
          %v679 = vadd.f32 %v674, %v677
          %v680 = vadd.f32 %v675, %v678
          %v681 = vadd.f32 %v583, %v679
          %v682 = vadd.f32 %v584, %v680
          %683 = vrot.lane.b32.xlu0 %v481, 1
          %v684 = vpop.permute.xlu0 %683
          %685 = vrot.lane.b32.xlu0 %v485, 1
          %v686 = vpop.permute.xlu0 %685
          %vm687 = vcmp.lt.s32.totalorder %v493, 1
          %v688 = vsel %vm687, %v684, %v686
          %v689 = vsel %vm687, %v686, %v684
          %v691 = vlaneseq
          %v692 = vshrl.u32 %v691, 7
          %v693 = vsub.s32 0, %v692
          %v694 = vrot.slane %v462, %v693
          %v695 = vlaneseq
          %v696 = vshrl.u32 %v695, 7
          %v697 = vsub.s32 1, %v696
          %v698 = vrot.slane %v462, %v697
          %v701 = vmul.f32 %v689, %v694
          %v702 = vmul.f32 %v688, %v698
          %703 = vrot.lane.b32.xlu0 %v514, 1
          %v704 = vpop.permute.xlu0 %703
          %705 = vrot.lane.b32.xlu0 %v518, 1
          %v706 = vpop.permute.xlu0 %705
          %v707 = vsel %vm687, %v704, %v706
          %v708 = vsel %vm687, %v706, %v704
          %v709 = vmul.f32 %v708, %v694
          %v710 = vmul.f32 %v707, %v698
          %v711 = vstv %s357
          %v712 = vmul.f32 %v711, %v701
          %v713 = vmul.f32 %v711, %v702
          %v714 = vstv %s406
          %v715 = vmul.f32 %v714, %v709
          %v716 = vmul.f32 %v714, %v710
          %v717 = vadd.f32 %v712, %v715
          %v718 = vadd.f32 %v713, %v716
          %v719 = vadd.f32 %v621, %v717
          %v720 = vadd.f32 %v622, %v718
          %v721 = vstv %s364
          %v722 = vmul.f32 %v721, %v701
          %v723 = vmul.f32 %v721, %v702
          %v724 = vstv %s413
          %v725 = vmul.f32 %v724, %v709
          %v726 = vmul.f32 %v724, %v710
          %v727 = vadd.f32 %v722, %v725
          %v728 = vadd.f32 %v723, %v726
          %v729 = vadd.f32 %v631, %v727
          %v730 = vadd.f32 %v632, %v728
          %v731 = vstv %s371
          %v732 = vmul.f32 %v731, %v701
          %v733 = vmul.f32 %v731, %v702
          %v734 = vstv %s420
          %v735 = vmul.f32 %v734, %v709
          %v736 = vmul.f32 %v734, %v710
          %v737 = vadd.f32 %v732, %v735
          %v738 = vadd.f32 %v733, %v736
          %v739 = vadd.f32 %v641, %v737
          %v740 = vadd.f32 %v642, %v738
          %v741 = vstv %s378
          %v742 = vmul.f32 %v741, %v701
          %v743 = vmul.f32 %v741, %v702
          %v744 = vstv %s427
          %v745 = vmul.f32 %v744, %v709
          %v746 = vmul.f32 %v744, %v710
          %v747 = vadd.f32 %v742, %v745
          %v748 = vadd.f32 %v743, %v746
          %v749 = vadd.f32 %v651, %v747
          %v750 = vadd.f32 %v652, %v748
          %v751 = vstv %s385
          %v752 = vmul.f32 %v751, %v701
          %v753 = vmul.f32 %v751, %v702
          %v754 = vstv %s434
          %v755 = vmul.f32 %v754, %v709
          %v756 = vmul.f32 %v754, %v710
          %v757 = vadd.f32 %v752, %v755
          %v758 = vadd.f32 %v753, %v756
          %v759 = vadd.f32 %v661, %v757
          %v760 = vadd.f32 %v662, %v758
          %v761 = vstv %s392
          %v762 = vmul.f32 %v761, %v701
          %v763 = vmul.f32 %v761, %v702
          %v764 = vstv %s441
          %v765 = vmul.f32 %v764, %v709
          %v766 = vmul.f32 %v764, %v710
          %v767 = vadd.f32 %v762, %v765
          %v768 = vadd.f32 %v763, %v766
          %v769 = vadd.f32 %v671, %v767
          %v770 = vadd.f32 %v672, %v768
          %v771 = vstv %s399
          %v772 = vmul.f32 %v771, %v701
          %v773 = vmul.f32 %v771, %v702
          %v774 = vstv %s448
          %v775 = vmul.f32 %v774, %v709
          %v776 = vmul.f32 %v774, %v710
          %v777 = vadd.f32 %v772, %v775
          %v778 = vadd.f32 %v773, %v776
          %v779 = vadd.f32 %v681, %v777
          %v780 = vadd.f32 %v682, %v778
          %v781 = vstv %s358
          %v782 = vmul.f32 %v781, %v353
          %v783 = vstv %s407
          %v784 = vmul.f32 %v783, %v354
          %v785 = vadd.f32 %v782, %v784
          %v787 = vlaneseq
          %v788 = vshrl.u32 %v787, 7
          %v789 = vsub.s32 0, %v788
          %v790 = vrot.slane %v785, %v789
          %v791 = vlaneseq
          %v792 = vshrl.u32 %v791, 7
          %v793 = vsub.s32 1, %v792
          %v794 = vrot.slane %v785, %v793
          %v797 = vadd.f32 %v719, %v790
          %v798 = vadd.f32 %v720, %v794
          %v799 = vstv %s365
          %v800 = vmul.f32 %v799, %v353
          %v801 = vstv %s414
          %v802 = vmul.f32 %v801, %v354
          %v803 = vadd.f32 %v800, %v802
          %v805 = vlaneseq
          %v806 = vshrl.u32 %v805, 7
          %v807 = vsub.s32 0, %v806
          %v808 = vrot.slane %v803, %v807
          %v809 = vlaneseq
          %v810 = vshrl.u32 %v809, 7
          %v811 = vsub.s32 1, %v810
          %v812 = vrot.slane %v803, %v811
          %v815 = vadd.f32 %v729, %v808
          %v816 = vadd.f32 %v730, %v812
          %v817 = vstv %s372
          %v818 = vmul.f32 %v817, %v353
          %v819 = vstv %s421
          %v820 = vmul.f32 %v819, %v354
          %v821 = vadd.f32 %v818, %v820
          %v823 = vlaneseq
          %v824 = vshrl.u32 %v823, 7
          %v825 = vsub.s32 0, %v824
          %v826 = vrot.slane %v821, %v825
          %v827 = vlaneseq
          %v828 = vshrl.u32 %v827, 7
          %v829 = vsub.s32 1, %v828
          %v830 = vrot.slane %v821, %v829
          %v833 = vadd.f32 %v739, %v826
          %v834 = vadd.f32 %v740, %v830
          %v835 = vstv %s379
          %v836 = vmul.f32 %v835, %v353
          %v837 = vstv %s428
          %v838 = vmul.f32 %v837, %v354
          %v839 = vadd.f32 %v836, %v838
          %v841 = vlaneseq
          %v842 = vshrl.u32 %v841, 7
          %v843 = vsub.s32 0, %v842
          %v844 = vrot.slane %v839, %v843
          %v845 = vlaneseq
          %v846 = vshrl.u32 %v845, 7
          %v847 = vsub.s32 1, %v846
          %v848 = vrot.slane %v839, %v847
          %v851 = vadd.f32 %v749, %v844
          %v852 = vadd.f32 %v750, %v848
          %v853 = vstv %s386
          %v854 = vmul.f32 %v853, %v353
          %v855 = vstv %s435
          %v856 = vmul.f32 %v855, %v354
          %v857 = vadd.f32 %v854, %v856
          %v859 = vlaneseq
          %v860 = vshrl.u32 %v859, 7
          %v861 = vsub.s32 0, %v860
          %v862 = vrot.slane %v857, %v861
          %v863 = vlaneseq
          %v864 = vshrl.u32 %v863, 7
          %v865 = vsub.s32 1, %v864
          %v866 = vrot.slane %v857, %v865
          %v869 = vadd.f32 %v759, %v862
          %v870 = vadd.f32 %v760, %v866
          %v871 = vstv %s393
          %v872 = vmul.f32 %v871, %v353
          %v873 = vstv %s442
          %v874 = vmul.f32 %v873, %v354
          %v875 = vadd.f32 %v872, %v874
          %v877 = vlaneseq
          %v878 = vshrl.u32 %v877, 7
          %v879 = vsub.s32 0, %v878
          %v880 = vrot.slane %v875, %v879
          %v881 = vlaneseq
          %v882 = vshrl.u32 %v881, 7
          %v883 = vsub.s32 1, %v882
          %v884 = vrot.slane %v875, %v883
          %v887 = vadd.f32 %v769, %v880
          %v888 = vadd.f32 %v770, %v884
          %v889 = vstv %s400
          %v890 = vmul.f32 %v889, %v353
          %v891 = vstv %s449
          %v892 = vmul.f32 %v891, %v354
          %v893 = vadd.f32 %v890, %v892
          %v895 = vlaneseq
          %v896 = vshrl.u32 %v895, 7
          %v897 = vsub.s32 0, %v896
          %v898 = vrot.slane %v893, %v897
          %v899 = vlaneseq
          %v900 = vshrl.u32 %v899, 7
          %v901 = vsub.s32 1, %v900
          %v902 = vrot.slane %v893, %v901
          %v905 = vadd.f32 %v779, %v898
          %v906 = vadd.f32 %v780, %v902
          %907 = vrot.lane.b32.xlu0 %v481, 127
          %v908 = vpop.permute.xlu0 %907
          %909 = vrot.lane.b32.xlu0 %v485, 127
          %v910 = vpop.permute.xlu0 %909
          %vm911 = vcmp.lt.s32.totalorder %v493, 127
          %v912 = vsel %vm911, %v908, %v910
          %v913 = vsel %vm911, %v910, %v908
          %v915 = vlaneseq
          %v916 = vshrl.u32 %v915, 7
          %v917 = vsub.s32 0, %v916
          %v918 = vrot.slane %v466, %v917
          %v919 = vlaneseq
          %v920 = vshrl.u32 %v919, 7
          %v921 = vsub.s32 1, %v920
          %v922 = vrot.slane %v466, %v921
          %v925 = vmul.f32 %v912, %v918
          %v926 = vmul.f32 %v913, %v922
          %927 = vrot.lane.b32.xlu0 %v514, 127
          %v928 = vpop.permute.xlu0 %927
          %929 = vrot.lane.b32.xlu0 %v518, 127
          %v930 = vpop.permute.xlu0 %929
          %v931 = vsel %vm911, %v928, %v930
          %v932 = vsel %vm911, %v930, %v928
          %v933 = vmul.f32 %v931, %v918
          %v934 = vmul.f32 %v932, %v922
          %v935 = vstv %s359
          %v936 = vmul.f32 %v935, %v925
          %v937 = vmul.f32 %v935, %v926
          %v938 = vstv %s408
          %v939 = vmul.f32 %v938, %v933
          %v940 = vmul.f32 %v938, %v934
          %v941 = vadd.f32 %v936, %v939
          %v942 = vadd.f32 %v937, %v940
          %v943 = vadd.f32 %v797, %v941
          %v944 = vadd.f32 %v798, %v942
          %v945 = vstv %s366
          %v946 = vmul.f32 %v945, %v925
          %v947 = vmul.f32 %v945, %v926
          %v948 = vstv %s415
          %v949 = vmul.f32 %v948, %v933
          %v950 = vmul.f32 %v948, %v934
          %v951 = vadd.f32 %v946, %v949
          %v952 = vadd.f32 %v947, %v950
          %v953 = vadd.f32 %v815, %v951
          %v954 = vadd.f32 %v816, %v952
          %v955 = vstv %s373
          %v956 = vmul.f32 %v955, %v925
          %v957 = vmul.f32 %v955, %v926
          %v958 = vstv %s422
          %v959 = vmul.f32 %v958, %v933
          %v960 = vmul.f32 %v958, %v934
          %v961 = vadd.f32 %v956, %v959
          %v962 = vadd.f32 %v957, %v960
          %v963 = vadd.f32 %v833, %v961
          %v964 = vadd.f32 %v834, %v962
          %v965 = vstv %s380
          %v966 = vmul.f32 %v965, %v925
          %v967 = vmul.f32 %v965, %v926
          %v968 = vstv %s429
          %v969 = vmul.f32 %v968, %v933
          %v970 = vmul.f32 %v968, %v934
          %v971 = vadd.f32 %v966, %v969
          %v972 = vadd.f32 %v967, %v970
          %v973 = vadd.f32 %v851, %v971
          %v974 = vadd.f32 %v852, %v972
          %v975 = vstv %s387
          %v976 = vmul.f32 %v975, %v925
          %v977 = vmul.f32 %v975, %v926
          %v978 = vstv %s436
          %v979 = vmul.f32 %v978, %v933
          %v980 = vmul.f32 %v978, %v934
          %v981 = vadd.f32 %v976, %v979
          %v982 = vadd.f32 %v977, %v980
          %v983 = vadd.f32 %v869, %v981
          %v984 = vadd.f32 %v870, %v982
          %v985 = vstv %s394
          %v986 = vmul.f32 %v985, %v925
          %v987 = vmul.f32 %v985, %v926
          %v988 = vstv %s443
          %v989 = vmul.f32 %v988, %v933
          %v990 = vmul.f32 %v988, %v934
          %v991 = vadd.f32 %v986, %v989
          %v992 = vadd.f32 %v987, %v990
          %v993 = vadd.f32 %v887, %v991
          %v994 = vadd.f32 %v888, %v992
          %v995 = vstv %s401
          %v996 = vmul.f32 %v995, %v925
          %v997 = vmul.f32 %v995, %v926
          %v998 = vstv %s450
          %v999 = vmul.f32 %v998, %v933
          %v1000 = vmul.f32 %v998, %v934
          %v1001 = vadd.f32 %v996, %v999
          %v1002 = vadd.f32 %v997, %v1000
          %v1003 = vadd.f32 %v905, %v1001
          %v1004 = vadd.f32 %v906, %v1002
          %1005 = vrot.lane.b32.xlu0 %v481, 126
          %v1006 = vpop.permute.xlu0 %1005
          %1007 = vrot.lane.b32.xlu0 %v485, 126
          %v1008 = vpop.permute.xlu0 %1007
          %vm1009 = vcmp.lt.s32.totalorder %v493, 126
          %v1010 = vsel %vm1009, %v1006, %v1008
          %v1011 = vsel %vm1009, %v1008, %v1006
          %v1013 = vlaneseq
          %v1014 = vshrl.u32 %v1013, 7
          %v1015 = vsub.s32 0, %v1014
          %v1016 = vrot.slane %v470, %v1015
          %v1017 = vlaneseq
          %v1018 = vshrl.u32 %v1017, 7
          %v1019 = vsub.s32 1, %v1018
          %v1020 = vrot.slane %v470, %v1019
          %v1023 = vmul.f32 %v1010, %v1016
          %v1024 = vmul.f32 %v1011, %v1020
          %1025 = vrot.lane.b32.xlu0 %v514, 126
          %v1026 = vpop.permute.xlu0 %1025
          %1027 = vrot.lane.b32.xlu0 %v518, 126
          %v1028 = vpop.permute.xlu0 %1027
          %v1029 = vsel %vm1009, %v1026, %v1028
          %v1030 = vsel %vm1009, %v1028, %v1026
          %v1031 = vmul.f32 %v1029, %v1016
          %v1032 = vmul.f32 %v1030, %v1020
          %v1033 = vstv %s360
          %v1034 = vmul.f32 %v1033, %v1023
          %v1035 = vmul.f32 %v1033, %v1024
          %v1036 = vstv %s409
          %v1037 = vmul.f32 %v1036, %v1031
          %v1038 = vmul.f32 %v1036, %v1032
          %v1039 = vadd.f32 %v1034, %v1037
          %v1040 = vadd.f32 %v1035, %v1038
          %v1041 = vadd.f32 %v943, %v1039
          %v1042 = vadd.f32 %v944, %v1040
          %v1043 = vstv %s367
          %v1044 = vmul.f32 %v1043, %v1023
          %v1045 = vmul.f32 %v1043, %v1024
          %v1046 = vstv %s416
          %v1047 = vmul.f32 %v1046, %v1031
          %v1048 = vmul.f32 %v1046, %v1032
          %v1049 = vadd.f32 %v1044, %v1047
          %v1050 = vadd.f32 %v1045, %v1048
          %v1051 = vadd.f32 %v953, %v1049
          %v1052 = vadd.f32 %v954, %v1050
          %v1053 = vstv %s374
          %v1054 = vmul.f32 %v1053, %v1023
          %v1055 = vmul.f32 %v1053, %v1024
          %v1056 = vstv %s423
          %v1057 = vmul.f32 %v1056, %v1031
          %v1058 = vmul.f32 %v1056, %v1032
          %v1059 = vadd.f32 %v1054, %v1057
          %v1060 = vadd.f32 %v1055, %v1058
          %v1061 = vadd.f32 %v963, %v1059
          %v1062 = vadd.f32 %v964, %v1060
          %v1063 = vstv %s381
          %v1064 = vmul.f32 %v1063, %v1023
          %v1065 = vmul.f32 %v1063, %v1024
          %v1066 = vstv %s430
          %v1067 = vmul.f32 %v1066, %v1031
          %v1068 = vmul.f32 %v1066, %v1032
          %v1069 = vadd.f32 %v1064, %v1067
          %v1070 = vadd.f32 %v1065, %v1068
          %v1071 = vadd.f32 %v973, %v1069
          %v1072 = vadd.f32 %v974, %v1070
          %v1073 = vstv %s388
          %v1074 = vmul.f32 %v1073, %v1023
          %v1075 = vmul.f32 %v1073, %v1024
          %v1076 = vstv %s437
          %v1077 = vmul.f32 %v1076, %v1031
          %v1078 = vmul.f32 %v1076, %v1032
          %v1079 = vadd.f32 %v1074, %v1077
          %v1080 = vadd.f32 %v1075, %v1078
          %v1081 = vadd.f32 %v983, %v1079
          %v1082 = vadd.f32 %v984, %v1080
          %v1083 = vstv %s395
          %v1084 = vmul.f32 %v1083, %v1023
          %v1085 = vmul.f32 %v1083, %v1024
          %v1086 = vstv %s444
          %v1087 = vmul.f32 %v1086, %v1031
          %v1088 = vmul.f32 %v1086, %v1032
          %v1089 = vadd.f32 %v1084, %v1087
          %v1090 = vadd.f32 %v1085, %v1088
          %v1091 = vadd.f32 %v993, %v1089
          %v1092 = vadd.f32 %v994, %v1090
          %v1093 = vstv %s402
          %v1094 = vmul.f32 %v1093, %v1023
          %v1095 = vmul.f32 %v1093, %v1024
          %v1096 = vstv %s451
          %v1097 = vmul.f32 %v1096, %v1031
          %v1098 = vmul.f32 %v1096, %v1032
          %v1099 = vadd.f32 %v1094, %v1097
          %v1100 = vadd.f32 %v1095, %v1098
          %v1101 = vadd.f32 %v1003, %v1099
          %v1102 = vadd.f32 %v1004, %v1100
          %1103 = vrot.lane.b32.xlu0 %v481, 125
          %v1104 = vpop.permute.xlu0 %1103
          %1105 = vrot.lane.b32.xlu0 %v485, 125
          %v1106 = vpop.permute.xlu0 %1105
          %vm1107 = vcmp.lt.s32.totalorder %v493, 125
          %v1108 = vsel %vm1107, %v1104, %v1106
          %v1109 = vsel %vm1107, %v1106, %v1104
          %v1111 = vlaneseq
          %v1112 = vshrl.u32 %v1111, 7
          %v1113 = vsub.s32 0, %v1112
          %v1114 = vrot.slane %v474, %v1113
          %v1115 = vlaneseq
          %v1116 = vshrl.u32 %v1115, 7
          %v1117 = vsub.s32 1, %v1116
          %v1118 = vrot.slane %v474, %v1117
          %v1121 = vmul.f32 %v1108, %v1114
          %v1122 = vmul.f32 %v1109, %v1118
          %1123 = vrot.lane.b32.xlu0 %v514, 125
          %v1124 = vpop.permute.xlu0 %1123
          %1125 = vrot.lane.b32.xlu0 %v518, 125
          %v1126 = vpop.permute.xlu0 %1125
          %v1127 = vsel %vm1107, %v1124, %v1126
          %v1128 = vsel %vm1107, %v1126, %v1124
          %v1129 = vmul.f32 %v1127, %v1114
          %v1130 = vmul.f32 %v1128, %v1118
          %v1131 = vstv %s361
          %v1132 = vmul.f32 %v1131, %v1121
          %v1133 = vmul.f32 %v1131, %v1122
          %v1134 = vstv %s410
          %v1135 = vmul.f32 %v1134, %v1129
          %v1136 = vmul.f32 %v1134, %v1130
          %v1137 = vadd.f32 %v1132, %v1135
          %v1138 = vadd.f32 %v1133, %v1136
          %v1139 = vadd.f32 %v1041, %v1137
          %v1140 = vadd.f32 %v1042, %v1138
          %v1141 = vstv %s368
          %v1142 = vmul.f32 %v1141, %v1121
          %v1143 = vmul.f32 %v1141, %v1122
          %v1144 = vstv %s417
          %v1145 = vmul.f32 %v1144, %v1129
          %v1146 = vmul.f32 %v1144, %v1130
          %v1147 = vadd.f32 %v1142, %v1145
          %v1148 = vadd.f32 %v1143, %v1146
          %v1149 = vadd.f32 %v1051, %v1147
          %v1150 = vadd.f32 %v1052, %v1148
          %v1151 = vstv %s375
          %v1152 = vmul.f32 %v1151, %v1121
          %v1153 = vmul.f32 %v1151, %v1122
          %v1154 = vstv %s424
          %v1155 = vmul.f32 %v1154, %v1129
          %v1156 = vmul.f32 %v1154, %v1130
          %v1157 = vadd.f32 %v1152, %v1155
          %v1158 = vadd.f32 %v1153, %v1156
          %v1159 = vadd.f32 %v1061, %v1157
          %v1160 = vadd.f32 %v1062, %v1158
          %v1161 = vstv %s382
          %v1162 = vmul.f32 %v1161, %v1121
          %v1163 = vmul.f32 %v1161, %v1122
          %v1164 = vstv %s431
          %v1165 = vmul.f32 %v1164, %v1129
          %v1166 = vmul.f32 %v1164, %v1130
          %v1167 = vadd.f32 %v1162, %v1165
          %v1168 = vadd.f32 %v1163, %v1166
          %v1169 = vadd.f32 %v1071, %v1167
          %v1170 = vadd.f32 %v1072, %v1168
          %v1171 = vstv %s389
          %v1172 = vmul.f32 %v1171, %v1121
          %v1173 = vmul.f32 %v1171, %v1122
          %v1174 = vstv %s438
          %v1175 = vmul.f32 %v1174, %v1129
          %v1176 = vmul.f32 %v1174, %v1130
          %v1177 = vadd.f32 %v1172, %v1175
          %v1178 = vadd.f32 %v1173, %v1176
          %v1179 = vadd.f32 %v1081, %v1177
          %v1180 = vadd.f32 %v1082, %v1178
          %v1181 = vstv %s396
          %v1182 = vmul.f32 %v1181, %v1121
          %v1183 = vmul.f32 %v1181, %v1122
          %v1184 = vstv %s445
          %v1185 = vmul.f32 %v1184, %v1129
          %v1186 = vmul.f32 %v1184, %v1130
          %v1187 = vadd.f32 %v1182, %v1185
          %v1188 = vadd.f32 %v1183, %v1186
          %v1189 = vadd.f32 %v1091, %v1187
          %v1190 = vadd.f32 %v1092, %v1188
          %v1191 = vstv %s403
          %v1192 = vmul.f32 %v1191, %v1121
          %v1193 = vmul.f32 %v1191, %v1122
          %v1194 = vstv %s452
          %v1195 = vmul.f32 %v1194, %v1129
          %v1196 = vmul.f32 %v1194, %v1130
          %v1197 = vadd.f32 %v1192, %v1195
          %v1198 = vadd.f32 %v1193, %v1196
          %v1199 = vadd.f32 %v1101, %v1197
          %v1200 = vadd.f32 %v1102, %v1198
          %v1201 = vstv %s453
          %1202 = vrot.lane.b32.xlu0 %v1139, 48
          %v1203 = vpop.permute.xlu0 %1202
          %1204 = vrot.lane.b32.xlu0 %v1140, 48
          %v1205 = vpop.permute.xlu0 %1204
          %vm1206 = vcmp.lt.s32.totalorder %v493, 48
          %v1207 = vsel %vm1206, %v1203, %v1205
          %v1208 = vsel %vm1206, %v1205, %v1203
          %v1210 = vlaneseq
          %v1211 = vshrl.u32 %v1210, 7
          %v1212 = vsub.s32 0, %v1211
          %v1213 = vrot.slane %v456, %v1212
          %v1214 = vlaneseq
          %v1215 = vshrl.u32 %v1214, 7
          %v1216 = vsub.s32 1, %v1215
          %v1217 = vrot.slane %v456, %v1216
          %v1220 = vmul.f32 %v1208, %v1213
          %v1221 = vmul.f32 %v1207, %v1217
          %v1222 = vadd.f32 %v1201, %v1220
          %v1223 = vadd.f32 %v1201, %v1221
          %1224 = vrot.lane.b32.xlu0 %v1149, 32
          %v1225 = vpop.permute.xlu0 %1224
          %1226 = vrot.lane.b32.xlu0 %v1150, 32
          %v1227 = vpop.permute.xlu0 %1226
          %vm1228 = vcmp.lt.s32.totalorder %v493, 32
          %v1229 = vsel %vm1228, %v1225, %v1227
          %v1230 = vsel %vm1228, %v1227, %v1225
          %v1232 = vlaneseq
          %v1233 = vshrl.u32 %v1232, 7
          %v1234 = vsub.s32 0, %v1233
          %v1235 = vrot.slane %v460, %v1234
          %v1236 = vlaneseq
          %v1237 = vshrl.u32 %v1236, 7
          %v1238 = vsub.s32 1, %v1237
          %v1239 = vrot.slane %v460, %v1238
          %v1242 = vmul.f32 %v1230, %v1235
          %v1243 = vmul.f32 %v1229, %v1239
          %v1244 = vadd.f32 %v1222, %v1242
          %v1245 = vadd.f32 %v1223, %v1243
          %1246 = vrot.lane.b32.xlu0 %v1159, 16
          %v1247 = vpop.permute.xlu0 %1246
          %1248 = vrot.lane.b32.xlu0 %v1160, 16
          %v1249 = vpop.permute.xlu0 %1248
          %vm1250 = vcmp.lt.s32.totalorder %v493, 16
          %v1251 = vsel %vm1250, %v1247, %v1249
          %v1252 = vsel %vm1250, %v1249, %v1247
          %v1254 = vlaneseq
          %v1255 = vshrl.u32 %v1254, 7
          %v1256 = vsub.s32 0, %v1255
          %v1257 = vrot.slane %v464, %v1256
          %v1258 = vlaneseq
          %v1259 = vshrl.u32 %v1258, 7
          %v1260 = vsub.s32 1, %v1259
          %v1261 = vrot.slane %v464, %v1260
          %v1264 = vmul.f32 %v1252, %v1257
          %v1265 = vmul.f32 %v1251, %v1261
          %v1266 = vadd.f32 %v1244, %v1264
          %v1267 = vadd.f32 %v1245, %v1265
          %v1268 = vadd.f32 %v1266, %v1169
          %v1269 = vadd.f32 %v1267, %v1170
          %1270 = vrot.lane.b32.xlu0 %v1179, 112
          %v1271 = vpop.permute.xlu0 %1270
          %1272 = vrot.lane.b32.xlu0 %v1180, 112
          %v1273 = vpop.permute.xlu0 %1272
          %vm1274 = vcmp.lt.s32.totalorder %v493, 112
          %v1275 = vsel %vm1274, %v1271, %v1273
          %v1276 = vsel %vm1274, %v1273, %v1271
          %v1278 = vlaneseq
          %v1279 = vshrl.u32 %v1278, 7
          %v1280 = vsub.s32 0, %v1279
          %v1281 = vrot.slane %v468, %v1280
          %v1282 = vlaneseq
          %v1283 = vshrl.u32 %v1282, 7
          %v1284 = vsub.s32 1, %v1283
          %v1285 = vrot.slane %v468, %v1284
          %v1288 = vmul.f32 %v1275, %v1281
          %v1289 = vmul.f32 %v1276, %v1285
          %v1290 = vadd.f32 %v1268, %v1288
          %v1291 = vadd.f32 %v1269, %v1289
          %1292 = vrot.lane.b32.xlu0 %v1189, 96
          %v1293 = vpop.permute.xlu0 %1292
          %1294 = vrot.lane.b32.xlu0 %v1190, 96
          %v1295 = vpop.permute.xlu0 %1294
          %vm1296 = vcmp.lt.s32.totalorder %v493, 96
          %v1297 = vsel %vm1296, %v1293, %v1295
          %v1298 = vsel %vm1296, %v1295, %v1293
          %v1300 = vlaneseq
          %v1301 = vshrl.u32 %v1300, 7
          %v1302 = vsub.s32 0, %v1301
          %v1303 = vrot.slane %v472, %v1302
          %v1304 = vlaneseq
          %v1305 = vshrl.u32 %v1304, 7
          %v1306 = vsub.s32 1, %v1305
          %v1307 = vrot.slane %v472, %v1306
          %v1310 = vmul.f32 %v1297, %v1303
          %v1311 = vmul.f32 %v1298, %v1307
          %v1312 = vadd.f32 %v1290, %v1310
          %v1313 = vadd.f32 %v1291, %v1311
          %1314 = vrot.lane.b32.xlu0 %v1199, 80
          %v1315 = vpop.permute.xlu0 %1314
          %1316 = vrot.lane.b32.xlu0 %v1200, 80
          %v1317 = vpop.permute.xlu0 %1316
          %vm1318 = vcmp.lt.s32.totalorder %v493, 80
          %v1319 = vsel %vm1318, %v1315, %v1317
          %v1320 = vsel %vm1318, %v1317, %v1315
          %v1322 = vlaneseq
          %v1323 = vshrl.u32 %v1322, 7
          %v1324 = vsub.s32 0, %v1323
          %v1325 = vrot.slane %v476, %v1324
          %v1326 = vlaneseq
          %v1327 = vshrl.u32 %v1326, 7
          %v1328 = vsub.s32 1, %v1327
          %v1329 = vrot.slane %v476, %v1328
          %v1332 = vmul.f32 %v1319, %v1325
          %v1333 = vmul.f32 %v1320, %v1329
          %v1334 = vadd.f32 %v1312, %v1332
          %v1335 = vadd.f32 %v1313, %v1333
          %v1336 = vxor.u32 %v1334, 2147483648
          %v1337 = vxor.u32 %v1335, 2147483648
          %v1338 = vmul.f32 %v1336, 1.442695
          %v1339 = vpow.pop %v1338
          %v1340 = vmul.f32 %v1337, 1.442695
          %v1341 = vpow.pop %v1340
          %v1342 = vadd.f32 %v1339, 1.0
          %v1343 = vadd.f32 %v1341, 1.0
          %v1344 = vrcp.pop %v1342
          %v1345 = vmul.f32 1.0, %v1344
          %v1346 = vrcp.pop %v1343
          %v1347 = vmul.f32 1.0, %v1346
          %v1350 = vcombine.low %v1345, %v1347
          %v1352 = vunpack.c.l.s4 1966171168
          %v1353 = vunpack.c.0.s8 %v1352
          %v1354 = vlaneseq
          %v1355 = vshrl.u32 %v1354, 7
          %v1356 = vsub.s32 %v1353, %v1355
          %v1357 = vrot.slane %v1350, %v1356
          %v1359 = vunpack.c.l.s4 1966171168
          %v1360 = vunpack.c.0.s8 %v1359
          %v1361 = vlaneseq
          %v1362 = vshrl.u32 %v1361, 7
          %v1363 = vsub.s32 %v1360, %v1362
          %v1364 = vrot.slane %v1357, %v1363
          %1366 = vst.msk [vmem:[%s259] sm:$0x3] %vm312, %v1364
        $region56: #{tpu_custom_call.1} parent=35 // pred_fallthru
          _
        %s1367 = sand.u32 %s135, 1
        %s1368 = scalar_lea.sflag [#allocation7], %s1367
        %s1369 = sand.u32 %s135, 1
        %s1370 = smul.addr %s1369, 2
        %s1371 = scalar_lea.vmem [#allocation12], %s1370
        // Predicated region
        $region57: #{tpu_custom_call.1} parent=35 // pred_check
          %p1372 = pneg %p145
        $region58: #{tpu_custom_call.1} parent=35 // pred_check_branch
          %1374 = sbr.rel (%p1372) target = $region60
        $region59: #{tpu_custom_call.1} parent=35 // pred_region
          %s1376 = ssub.s32 32, 32
          %1377 = vsyncadd %s1368, %s1376
          %s1378 = smul.addr %s28, 2
          %s1379 = smul.addr %s1378, 16
          %s1380 = scalar_lea.hbm %s4, %s1379
          %s1382 = sshll.u32 %s1371, 4
          %s1383 = int_to_ptr.vmem [resolvable:$true] %s1382
          %1385 = dma.vmem_to_hbm [thread:$0]  %s1383, 32, %s1380, %s1368
        $region60: #{tpu_custom_call.1} parent=35 // pred_fallthru
          _
      $region36: #{tpu_custom_call.1} parent=5 // pred_fallthru
        _
      %p1386 = scmp.le.s32.totalorder 2, %s19
      // Predicated region
      $region61: #{tpu_custom_call.1} parent=5 // pred_check
        %p1387 = pneg %p1386
      $region62: #{tpu_custom_call.1} parent=5 // pred_check_branch
        %1389 = sbr.rel (%p1387) target = $region64
      $region63: #{tpu_custom_call.1} parent=5 // pred_region
        %s1390 = ssub.s32 %s19, 2
        // Predicated region
        $region65: #{tpu_custom_call.1} parent=63 // pred_check
          %p1391 = pneg %p151
        $region66: #{tpu_custom_call.1} parent=63 // pred_check_branch
          %1393 = sbr.rel (%p1391) target = $region68
        $region67: #{tpu_custom_call.1} parent=63 // pred_region
          %s1394 = sand.u32 %s136, 1
          %s1395 = scalar_lea.sflag [#allocation7], %s1394
          %s1396 = sand.u32 %s136, 1
          %s1397 = smul.addr %s1396, 2
          %s1398 = scalar_lea.vmem [#allocation12], %s1397
          %1399 = dma.done %s1395, 32
        $region68: #{tpu_custom_call.1} parent=63 // pred_fallthru
          _
      $region64: #{tpu_custom_call.1} parent=5 // pred_fallthru
        _
    $region6: #{tpu_custom_call.1} parent=1 // loop_footer
      %s23 = sadd.s32 1, %s19
    $region7: #{tpu_custom_call.1} parent=1 // loop_footer_branch
      %18 = sbr.rel target = $region3
    $region8: #{tpu_custom_call.1} parent=1 // loop_exit
      _
    %1400 = vsyncpa [#allocation6], 1
    %s1401 = scalar_lea.sflag [#allocation6], 1
    %1402 = vsyncpa %s1401, 1
    %1403 = vsyncpa [#allocation10], 1
    %1404 = vsyncpa [#allocation7], 1
    %s1405 = scalar_lea.sflag [#allocation7], 1
    %1406 = vsyncpa %s1405, 1
    %1407 = vsyncpa [#allocation8], 1
    %s1408 = scalar_lea.sflag [#allocation8], 1
    %1409 = vsyncpa %s1408, 1

</llo_original>
